<compile_context>
chip_gen: v7x
topology: tpu7x:2x2x1
jax: 0.10.0
libtpu: 0.0.40
codegen_flags: <defaults>
</compile_context>

<pallas_src>
import jax
import jax.numpy as jnp
from jax import lax
from jax.experimental import pallas as pl
from jax.experimental.pallas import tpu as pltpu


_UNROLL_THRESHOLD = 32  # fully unroll the time loop when S <= this


def _orbit_lstm_kernel(x_ref, wih0_ref, b0_ref, whh0_ref, w1_ref, b1_ref,
                       wfc_ref, bfc_ref, o_ref):
    tm = x_ref.shape[0]          # batch tile
    S = x_ref.shape[1]           # sequence length (time on the lane axis)
    H = whh0_ref.shape[0]        # hidden size (64)

    wih0 = wih0_ref[...]         # (1, 4H)  f32  layer-0 input weights (K=1, VPU path)
    b0 = b0_ref[...]             # (1, 4H)  f32  b_ih_l0 + b_hh_l0
    whh0 = whh0_ref[...]         # (H, 4H)  bf16 layer-0 recurrent weights (MXU)
    w1 = w1_ref[...]             # (2H, 4H) bf16 fused [wih_l1; whh_l1] (MXU, K=2H)
    b1 = b1_ref[...]             # (1, 4H)  f32  b_ih_l1 + b_hh_l1

    def cell(gates, c_prev):
        # PyTorch gate order i, f, g, o.  i|f sigmoids merged: one full
        # 128-lane EUP call instead of two half-lane (64-wide) ones.
        s_if = jax.nn.sigmoid(gates[:, :2 * H])
        g = jnp.tanh(gates[:, 2 * H:3 * H])
        o = jax.nn.sigmoid(gates[:, 3 * H:])
        c = s_if[:, H:2 * H] * c_prev + s_if[:, :H] * g
        h = o * jnp.tanh(c)
        return h, c

    def step(x_t, h0, c0, h1, c1):
        # Layer 0: K = input_size = 1, so the input projection is a VPU
        # broadcast (outer product); only the recurrent term hits the MXU.
        # (wih0/b0 broadcasts stay (1,4H) -> (tm,4H) per step; pre-broadcasting
        # to (tm,4H) would cost ~64 vregs of live range at tm=256.)
        g0 = (x_t * wih0 + b0
              + jnp.dot(h0, whh0, preferred_element_type=jnp.float32))
        h0f, c0 = cell(g0, c0)
        h0 = h0f.astype(jnp.bfloat16)
        # Layer 1: single fused K=2H bf16 MXU matmul, f32 accumulation.
        g1 = (jnp.dot(jnp.concatenate([h0, h1], axis=-1), w1,
                      preferred_element_type=jnp.float32) + b1)
        h1f, c1 = cell(g1, c1)
        h1 = h1f.astype(jnp.bfloat16)
        return h0, c0, h1, c1

    zc = jnp.zeros((tm, H), jnp.float32)
    zh = jnp.zeros((tm, H), jnp.bfloat16)
    carry = (zh, zc, zh, zc)

    if S <= _UNROLL_THRESHOLD:
        # Full unroll with static lane slices: best LLO visibility for
        # overlapping step t's VPU/EUP cell work with step t+1's MXU pushes.
        for t in range(S):
            carry = step(x_ref[:, t:t + 1], *carry)
    else:
        def body(t, c):
            return step(x_ref[:, pl.ds(t, 1)], *c)
        carry = lax.fori_loop(0, S, body, carry, unroll=2)

    h1 = carry[2]
    # fc on the last step's top-layer hidden state; wfc is lane-padded to 128
    # outputs so the store / output DMA is lane-dense.
    o_ref[...] = (jnp.dot(h1, wfc_ref[...], preferred_element_type=jnp.float32)
                  + bfc_ref[...]).astype(o_ref.dtype)


def _round_up(a, b):
    return (a + b - 1) // b * b


def _cdiv(a, b):
    return -(-a // b)


def _choose_batch_tile(N, S, *, tm_max=256, x_budget_bytes=8 << 20):
    """Batch tile: multiple of 8, capped so the double-buffered x block stays
    well under the scoped VMEM limit, and >=2 tiles when N > 8 so both v7x
    TensorCores get work.  Sized from N to avoid padding nearly doubling work."""
    lanes = _round_up(max(S, 1), 128)
    tm_cap = max(8, (x_budget_bytes // (2 * lanes * 4)) // 8 * 8)
    tm_max = min(tm_max, tm_cap)
    if N <= 8:
        return 8
    n_tiles = max(2, _cdiv(N, tm_max))
    return min(tm_max, _round_up(_cdiv(N, n_tiles), 8))


def orbit_rnn_forward(t_sequence, params):
    """t_sequence: (N, S, 1) float32, or (N, 1) which (like the PyTorch
    unsqueeze(1)) is treated as a length-1 sequence.  Returns (N, 2) float32."""
    wih0, whh0, b0, wih1, whh1, b1, wfc, bfc = params
    if t_sequence.ndim == 2:
        t_sequence = t_sequence[:, None, :]                 # (N, 1, 1)
    N, S, in_size = t_sequence.shape
    assert in_size == 1, "OrbitRNN uses input_size=1"
    H = whh0.shape[0]
    out_size = wfc.shape[1]

    tm = _choose_batch_tile(N, S)
    n_pad = _round_up(N, tm)

    # x laid out (batch, time): no lane-padded singleton feature dim.
    x = jnp.pad(t_sequence.astype(jnp.float32)[:, :, 0],
                ((0, n_pad - N), (0, 0)))                   # (n_pad, S)

    # MXU operands in bf16; fused layer-1 weight; fc lane-padded to 128 outputs.
    whh0_b = whh0.astype(jnp.bfloat16)
    w1 = jnp.concatenate([wih1, whh1], axis=0).astype(jnp.bfloat16)   # (2H, 4H)
    n_out_pad = 128
    wfc_p = jnp.zeros((H, n_out_pad), jnp.bfloat16).at[:, :out_size].set(
        wfc.astype(jnp.bfloat16))
    bfc_p = jnp.zeros((1, n_out_pad), jnp.float32).at[:, :out_size].set(
        bfc.astype(jnp.float32))

    rep = lambda a: pl.BlockSpec(a.shape, lambda i: (0, 0))  # replicated weights

    out = pl.pallas_call(
        _orbit_lstm_kernel,
        out_shape=jax.ShapeDtypeStruct((n_pad, n_out_pad), jnp.float32),
        grid_spec=pltpu.PrefetchScalarGridSpec(
            num_scalar_prefetch=0,
            grid=(n_pad // tm,),
            in_specs=[
                pl.BlockSpec((tm, S), lambda i: (i, 0)),     # batch tile of sequence
                rep(wih0), rep(b0), rep(whh0_b), rep(w1), rep(b1),
                rep(wfc_p), rep(bfc_p),
            ],
            out_specs=pl.BlockSpec((tm, n_out_pad), lambda i: (i, 0)),
        ),
        compiler_params=pltpu.CompilerParams(
            dimension_semantics=("parallel",)),
    )(x, wih0, b0, whh0_b, w1, b1, wfc_p, bfc_p)
    return out[:N, :out_size]


def init_params(key, *, hidden=64, out=2):
    """PyTorch-style uniform(-1/sqrt(H), 1/sqrt(H)) init; weights stored (in, out)
    so the kernel computes x @ W.  Biases are pre-summed (b_ih + b_hh)."""
    ks = jax.random.split(key, 10)
    bound = 1.0 / jnp.sqrt(jnp.float32(hidden))
    u = lambda k, shape: jax.random.uniform(k, shape, jnp.float32, -bound, bound)
    wih0 = u(ks[0], (1, 4 * hidden))
    whh0 = u(ks[1], (hidden, 4 * hidden))
    b0 = u(ks[2], (1, 4 * hidden)) + u(ks[3], (1, 4 * hidden))
    wih1 = u(ks[4], (hidden, 4 * hidden))
    whh1 = u(ks[5], (hidden, 4 * hidden))
    b1 = u(ks[6], (1, 4 * hidden)) + u(ks[7], (1, 4 * hidden))
    wfc = u(ks[8], (hidden, out))
    bfc = u(ks[9], (1, out))
    return (wih0, whh0, b0, wih1, whh1, b1, wfc, bfc)


def reference_forward(t_sequence, params):
    """Pure-JAX f32 reference of the PyTorch OrbitRNN forward."""
    wih0, whh0, b0, wih1, whh1, b1, wfc, bfc = params
    if t_sequence.ndim == 2:
        t_sequence = t_sequence[:, None, :]
    N, S, _ = t_sequence.shape
    H = whh0.shape[0]

    def cell(g, c_prev):
        i, f, gg, o = jnp.split(g, 4, axis=-1)
        c = jax.nn.sigmoid(f) * c_prev + jax.nn.sigmoid(i) * jnp.tanh(gg)
        h = jax.nn.sigmoid(o) * jnp.tanh(c)
        return h, c

    h0 = c0 = h1 = c1 = jnp.zeros((N, H), jnp.float32)
    for s in range(S):
        x_t = t_sequence[:, s, :]
        h0, c0 = cell(x_t @ wih0 + h0 @ whh0 + b0, c0)
        h1, c1 = cell(h0 @ wih1 + h1 @ whh1 + b1, c1)
    return h1 @ wfc + bfc


if __name__ == "__main__":
    key = jax.random.PRNGKey(0)
    k_in, k_p = jax.random.split(key)

    # Small demo consistent with the module: batch=8 sequences of length 8,
    # input_size=1 (normalized time values), hidden=64, output=2.
    N, S = 8, 8
    t_seq = jax.random.normal(k_in, (N, S, 1), jnp.float32)
    params = init_params(k_p)

    out = jax.block_until_ready(orbit_rnn_forward(t_seq, params))
    ref = reference_forward(t_seq, params)

    assert out.shape == (N, 2)
    err = float(jnp.max(jnp.abs(out - ref)))
    # bf16 MXU operands with f32 accumulation vs the pure-f32 reference.
    assert err < 5e-2, f"mismatch vs f32 reference, max abs err {err}"

    print("KERNEL_OK")
</pallas_src>

<mosaic_0001>
module attributes {stable_mosaic.version = 11 : i64} {
  func.func @_orbit_lstm_kernel(%arg0: i32, %arg1: memref<8x8xf32, #tpu.memory_space<vmem>>, %arg2: memref<1x256xf32, #tpu.memory_space<vmem>>, %arg3: memref<1x256xf32, #tpu.memory_space<vmem>>, %arg4: memref<64x256xbf16, #tpu.memory_space<vmem>>, %arg5: memref<128x256xbf16, #tpu.memory_space<vmem>>, %arg6: memref<1x256xf32, #tpu.memory_space<vmem>>, %arg7: memref<64x128xbf16, #tpu.memory_space<vmem>>, %arg8: memref<1x128xf32, #tpu.memory_space<vmem>>, %arg9: memref<8x128xf32, #tpu.memory_space<vmem>>) attributes {dimension_semantics = [#tpu.dimension_semantics<parallel>], iteration_bounds = array<i64: 1>, scalar_prefetch = 0 : i64, scratch_operands = 0 : i64, tpu.core_type = #tpu.core_type<tc>, window_params = [{transform_indices = @transform_0, window_bounds = array<i64: 8, 8>}, {pipeline_mode = #tpu.pipeline_mode<synchronous>, transform_indices = @transform_1, window_bounds = array<i64: 1, 256>}, {pipeline_mode = #tpu.pipeline_mode<synchronous>, transform_indices = @transform_2, window_bounds = array<i64: 1, 256>}, {pipeline_mode = #tpu.pipeline_mode<synchronous>, transform_indices = @transform_3, window_bounds = array<i64: 64, 256>}, {pipeline_mode = #tpu.pipeline_mode<synchronous>, transform_indices = @transform_4, window_bounds = array<i64: 128, 256>}, {pipeline_mode = #tpu.pipeline_mode<synchronous>, transform_indices = @transform_5, window_bounds = array<i64: 1, 256>}, {pipeline_mode = #tpu.pipeline_mode<synchronous>, transform_indices = @transform_6, window_bounds = array<i64: 64, 128>}, {pipeline_mode = #tpu.pipeline_mode<synchronous>, transform_indices = @transform_7, window_bounds = array<i64: 1, 128>}, {transform_indices = @transform_8, window_bounds = array<i64: 8, 128>}]} {
    %c0 = arith.constant 0 : index
    %c0_0 = arith.constant 0 : index
    %0 = vector.load %arg2[%c0, %c0_0] : memref<1x256xf32, #tpu.memory_space<vmem>>, vector<1x256xf32>
    %c0_1 = arith.constant 0 : index
    %c0_2 = arith.constant 0 : index
    %1 = vector.load %arg3[%c0_1, %c0_2] : memref<1x256xf32, #tpu.memory_space<vmem>>, vector<1x256xf32>
    %c0_3 = arith.constant 0 : index
    %c0_4 = arith.constant 0 : index
    %2 = vector.load %arg4[%c0_3, %c0_4] : memref<64x256xbf16, #tpu.memory_space<vmem>>, vector<64x256xbf16>
    %c0_5 = arith.constant 0 : index
    %c0_6 = arith.constant 0 : index
    %3 = vector.load %arg5[%c0_5, %c0_6] : memref<128x256xbf16, #tpu.memory_space<vmem>>, vector<128x256xbf16>
    %c0_7 = arith.constant 0 : index
    %c0_8 = arith.constant 0 : index
    %4 = vector.load %arg6[%c0_7, %c0_8] : memref<1x256xf32, #tpu.memory_space<vmem>>, vector<1x256xf32>
    %cst = arith.constant 0.000000e+00 : f32
    %5 = vector.broadcast %cst : f32 to vector<8x64xf32>
    %cst_9 = arith.constant 0.000000e+00 : bf16
    %6 = vector.broadcast %cst_9 : bf16 to vector<8x64xbf16>
    %c0_10 = arith.constant 0 : index
    %c0_11 = arith.constant 0 : index
    %7 = vector.load %arg1[%c0_10, %c0_11] : memref<8x8xf32, #tpu.memory_space<vmem>>, vector<8x1xf32>
    %8 = vector.broadcast %7 : vector<8x1xf32> to vector<8x256xf32>
    %9 = vector.broadcast %0 : vector<1x256xf32> to vector<8x256xf32>
    %10 = arith.mulf %8, %9 : vector<8x256xf32>
    %11 = vector.broadcast %1 : vector<1x256xf32> to vector<8x256xf32>
    %12 = arith.addf %10, %11 : vector<8x256xf32>
    %cst_12 = arith.constant dense<0.000000e+00> : vector<8x256xf32>
    %13 = tpu.matmul %6, %2, %cst_12 {dimension_numbers = #tpu.dot_dimension_numbers<[1], [0], [0], [1], [0, 0, 1, 1], [], []>} : vector<8x64xbf16>, vector<64x256xbf16>, vector<8x256xf32> -> vector<8x256xf32>
    %14 = arith.addf %12, %13 : vector<8x256xf32>
    %15 = vector.extract_strided_slice %14 {offsets = [0, 0], sizes = [8, 128], strides = [1, 1]} : vector<8x256xf32> to vector<8x128xf32>
    %16 = arith.negf %15 : vector<8x128xf32>
    %17 = math.exp %16 : vector<8x128xf32>
    %cst_13 = arith.constant 1.000000e+00 : f32
    %18 = vector.broadcast %cst_13 : f32 to vector<8x128xf32>
    %19 = arith.addf %18, %17 : vector<8x128xf32>
    %20 = arith.divf %18, %19 : vector<8x128xf32>
    %21 = vector.extract_strided_slice %14 {offsets = [0, 128], sizes = [8, 64], strides = [1, 1]} : vector<8x256xf32> to vector<8x64xf32>
    %22 = math.tanh %21 : vector<8x64xf32>
    %23 = vector.extract_strided_slice %14 {offsets = [0, 192], sizes = [8, 64], strides = [1, 1]} : vector<8x256xf32> to vector<8x64xf32>
    %24 = arith.negf %23 : vector<8x64xf32>
    %25 = math.exp %24 : vector<8x64xf32>
    %cst_14 = arith.constant 1.000000e+00 : f32
    %26 = vector.broadcast %cst_14 : f32 to vector<8x64xf32>
    %27 = arith.addf %26, %25 : vector<8x64xf32>
    %28 = arith.divf %26, %27 : vector<8x64xf32>
    %29 = vector.extract_strided_slice %20 {offsets = [0, 64], sizes = [8, 64], strides = [1, 1]} : vector<8x128xf32> to vector<8x64xf32>
    %30 = arith.mulf %29, %5 : vector<8x64xf32>
    %31 = vector.extract_strided_slice %20 {offsets = [0, 0], sizes = [8, 64], strides = [1, 1]} : vector<8x128xf32> to vector<8x64xf32>
    %32 = arith.mulf %31, %22 : vector<8x64xf32>
    %33 = arith.addf %30, %32 : vector<8x64xf32>
    %34 = math.tanh %33 : vector<8x64xf32>
    %35 = arith.mulf %28, %34 : vector<8x64xf32>
    %36 = arith.truncf %35 : vector<8x64xf32> to vector<8x64xbf16>
    %37 = tpu.concatenate %36, %6 in 1 : vector<8x64xbf16>, vector<8x64xbf16> -> vector<8x128xbf16>
    %cst_15 = arith.constant dense<0.000000e+00> : vector<8x256xf32>
    %38 = tpu.matmul %37, %3, %cst_15 {dimension_numbers = #tpu.dot_dimension_numbers<[1], [0], [0], [1], [0, 0, 1, 1], [], []>} : vector<8x128xbf16>, vector<128x256xbf16>, vector<8x256xf32> -> vector<8x256xf32>
    %39 = vector.broadcast %4 : vector<1x256xf32> to vector<8x256xf32>
    %40 = arith.addf %38, %39 : vector<8x256xf32>
    %41 = vector.extract_strided_slice %40 {offsets = [0, 0], sizes = [8, 128], strides = [1, 1]} : vector<8x256xf32> to vector<8x128xf32>
    %42 = arith.negf %41 : vector<8x128xf32>
    %43 = math.exp %42 : vector<8x128xf32>
    %cst_16 = arith.constant 1.000000e+00 : f32
    %44 = vector.broadcast %cst_16 : f32 to vector<8x128xf32>
    %45 = arith.addf %44, %43 : vector<8x128xf32>
    %46 = arith.divf %44, %45 : vector<8x128xf32>
    %47 = vector.extract_strided_slice %40 {offsets = [0, 128], sizes = [8, 64], strides = [1, 1]} : vector<8x256xf32> to vector<8x64xf32>
    %48 = math.tanh %47 : vector<8x64xf32>
    %49 = vector.extract_strided_slice %40 {offsets = [0, 192], sizes = [8, 64], strides = [1, 1]} : vector<8x256xf32> to vector<8x64xf32>
    %50 = arith.negf %49 : vector<8x64xf32>
    %51 = math.exp %50 : vector<8x64xf32>
    %cst_17 = arith.constant 1.000000e+00 : f32
    %52 = vector.broadcast %cst_17 : f32 to vector<8x64xf32>
    %53 = arith.addf %52, %51 : vector<8x64xf32>
    %54 = arith.divf %52, %53 : vector<8x64xf32>
    %55 = vector.extract_strided_slice %46 {offsets = [0, 64], sizes = [8, 64], strides = [1, 1]} : vector<8x128xf32> to vector<8x64xf32>
    %56 = arith.mulf %55, %5 : vector<8x64xf32>
    %57 = vector.extract_strided_slice %46 {offsets = [0, 0], sizes = [8, 64], strides = [1, 1]} : vector<8x128xf32> to vector<8x64xf32>
    %58 = arith.mulf %57, %48 : vector<8x64xf32>
    %59 = arith.addf %56, %58 : vector<8x64xf32>
    %60 = math.tanh %59 : vector<8x64xf32>
    %61 = arith.mulf %54, %60 : vector<8x64xf32>
    %62 = arith.truncf %61 : vector<8x64xf32> to vector<8x64xbf16>
    %c0_18 = arith.constant 0 : index
    %c1 = arith.constant 1 : index
    %63 = vector.load %arg1[%c0_18, %c1] : memref<8x8xf32, #tpu.memory_space<vmem>>, vector<8x1xf32>
    %64 = vector.broadcast %63 : vector<8x1xf32> to vector<8x256xf32>
    %65 = vector.broadcast %0 : vector<1x256xf32> to vector<8x256xf32>
    %66 = arith.mulf %64, %65 : vector<8x256xf32>
    %67 = vector.broadcast %1 : vector<1x256xf32> to vector<8x256xf32>
    %68 = arith.addf %66, %67 : vector<8x256xf32>
    %cst_19 = arith.constant dense<0.000000e+00> : vector<8x256xf32>
    %69 = tpu.matmul %36, %2, %cst_19 {dimension_numbers = #tpu.dot_dimension_numbers<[1], [0], [0], [1], [0, 0, 1, 1], [], []>} : vector<8x64xbf16>, vector<64x256xbf16>, vector<8x256xf32> -> vector<8x256xf32>
    %70 = arith.addf %68, %69 : vector<8x256xf32>
    %71 = vector.extract_strided_slice %70 {offsets = [0, 0], sizes = [8, 128], strides = [1, 1]} : vector<8x256xf32> to vector<8x128xf32>
    %72 = arith.negf %71 : vector<8x128xf32>
    %73 = math.exp %72 : vector<8x128xf32>
    %cst_20 = arith.constant 1.000000e+00 : f32
    %74 = vector.broadcast %cst_20 : f32 to vector<8x128xf32>
    %75 = arith.addf %74, %73 : vector<8x128xf32>
    %76 = arith.divf %74, %75 : vector<8x128xf32>
    %77 = vector.extract_strided_slice %70 {offsets = [0, 128], sizes = [8, 64], strides = [1, 1]} : vector<8x256xf32> to vector<8x64xf32>
    %78 = math.tanh %77 : vector<8x64xf32>
    %79 = vector.extract_strided_slice %70 {offsets = [0, 192], sizes = [8, 64], strides = [1, 1]} : vector<8x256xf32> to vector<8x64xf32>
    %80 = arith.negf %79 : vector<8x64xf32>
    %81 = math.exp %80 : vector<8x64xf32>
    %cst_21 = arith.constant 1.000000e+00 : f32
    %82 = vector.broadcast %cst_21 : f32 to vector<8x64xf32>
    %83 = arith.addf %82, %81 : vector<8x64xf32>
    %84 = arith.divf %82, %83 : vector<8x64xf32>
    %85 = vector.extract_strided_slice %76 {offsets = [0, 64], sizes = [8, 64], strides = [1, 1]} : vector<8x128xf32> to vector<8x64xf32>
    %86 = arith.mulf %85, %33 : vector<8x64xf32>
    %87 = vector.extract_strided_slice %76 {offsets = [0, 0], sizes = [8, 64], strides = [1, 1]} : vector<8x128xf32> to vector<8x64xf32>
    %88 = arith.mulf %87, %78 : vector<8x64xf32>
    %89 = arith.addf %86, %88 : vector<8x64xf32>
    %90 = math.tanh %89 : vector<8x64xf32>
    %91 = arith.mulf %84, %90 : vector<8x64xf32>
    %92 = arith.truncf %91 : vector<8x64xf32> to vector<8x64xbf16>
    %93 = tpu.concatenate %92, %62 in 1 : vector<8x64xbf16>, vector<8x64xbf16> -> vector<8x128xbf16>
    %cst_22 = arith.constant dense<0.000000e+00> : vector<8x256xf32>
    %94 = tpu.matmul %93, %3, %cst_22 {dimension_numbers = #tpu.dot_dimension_numbers<[1], [0], [0], [1], [0, 0, 1, 1], [], []>} : vector<8x128xbf16>, vector<128x256xbf16>, vector<8x256xf32> -> vector<8x256xf32>
    %95 = vector.broadcast %4 : vector<1x256xf32> to vector<8x256xf32>
    %96 = arith.addf %94, %95 : vector<8x256xf32>
    %97 = vector.extract_strided_slice %96 {offsets = [0, 0], sizes = [8, 128], strides = [1, 1]} : vector<8x256xf32> to vector<8x128xf32>
    %98 = arith.negf %97 : vector<8x128xf32>
    %99 = math.exp %98 : vector<8x128xf32>
    %cst_23 = arith.constant 1.000000e+00 : f32
    %100 = vector.broadcast %cst_23 : f32 to vector<8x128xf32>
    %101 = arith.addf %100, %99 : vector<8x128xf32>
    %102 = arith.divf %100, %101 : vector<8x128xf32>
    %103 = vector.extract_strided_slice %96 {offsets = [0, 128], sizes = [8, 64], strides = [1, 1]} : vector<8x256xf32> to vector<8x64xf32>
    %104 = math.tanh %103 : vector<8x64xf32>
    %105 = vector.extract_strided_slice %96 {offsets = [0, 192], sizes = [8, 64], strides = [1, 1]} : vector<8x256xf32> to vector<8x64xf32>
    %106 = arith.negf %105 : vector<8x64xf32>
    %107 = math.exp %106 : vector<8x64xf32>
    %cst_24 = arith.constant 1.000000e+00 : f32
    %108 = vector.broadcast %cst_24 : f32 to vector<8x64xf32>
    %109 = arith.addf %108, %107 : vector<8x64xf32>
    %110 = arith.divf %108, %109 : vector<8x64xf32>
    %111 = vector.extract_strided_slice %102 {offsets = [0, 64], sizes = [8, 64], strides = [1, 1]} : vector<8x128xf32> to vector<8x64xf32>
    %112 = arith.mulf %111, %59 : vector<8x64xf32>
    %113 = vector.extract_strided_slice %102 {offsets = [0, 0], sizes = [8, 64], strides = [1, 1]} : vector<8x128xf32> to vector<8x64xf32>
    %114 = arith.mulf %113, %104 : vector<8x64xf32>
    %115 = arith.addf %112, %114 : vector<8x64xf32>
    %116 = math.tanh %115 : vector<8x64xf32>
    %117 = arith.mulf %110, %116 : vector<8x64xf32>
    %118 = arith.truncf %117 : vector<8x64xf32> to vector<8x64xbf16>
    %c0_25 = arith.constant 0 : index
    %c2 = arith.constant 2 : index
    %119 = vector.load %arg1[%c0_25, %c2] : memref<8x8xf32, #tpu.memory_space<vmem>>, vector<8x1xf32>
    %120 = vector.broadcast %119 : vector<8x1xf32> to vector<8x256xf32>
    %121 = vector.broadcast %0 : vector<1x256xf32> to vector<8x256xf32>
    %122 = arith.mulf %120, %121 : vector<8x256xf32>
    %123 = vector.broadcast %1 : vector<1x256xf32> to vector<8x256xf32>
    %124 = arith.addf %122, %123 : vector<8x256xf32>
    %cst_26 = arith.constant dense<0.000000e+00> : vector<8x256xf32>
    %125 = tpu.matmul %92, %2, %cst_26 {dimension_numbers = #tpu.dot_dimension_numbers<[1], [0], [0], [1], [0, 0, 1, 1], [], []>} : vector<8x64xbf16>, vector<64x256xbf16>, vector<8x256xf32> -> vector<8x256xf32>
    %126 = arith.addf %124, %125 : vector<8x256xf32>
    %127 = vector.extract_strided_slice %126 {offsets = [0, 0], sizes = [8, 128], strides = [1, 1]} : vector<8x256xf32> to vector<8x128xf32>
    %128 = arith.negf %127 : vector<8x128xf32>
    %129 = math.exp %128 : vector<8x128xf32>
    %cst_27 = arith.constant 1.000000e+00 : f32
    %130 = vector.broadcast %cst_27 : f32 to vector<8x128xf32>
    %131 = arith.addf %130, %129 : vector<8x128xf32>
    %132 = arith.divf %130, %131 : vector<8x128xf32>
    %133 = vector.extract_strided_slice %126 {offsets = [0, 128], sizes = [8, 64], strides = [1, 1]} : vector<8x256xf32> to vector<8x64xf32>
    %134 = math.tanh %133 : vector<8x64xf32>
    %135 = vector.extract_strided_slice %126 {offsets = [0, 192], sizes = [8, 64], strides = [1, 1]} : vector<8x256xf32> to vector<8x64xf32>
    %136 = arith.negf %135 : vector<8x64xf32>
    %137 = math.exp %136 : vector<8x64xf32>
    %cst_28 = arith.constant 1.000000e+00 : f32
    %138 = vector.broadcast %cst_28 : f32 to vector<8x64xf32>
    %139 = arith.addf %138, %137 : vector<8x64xf32>
    %140 = arith.divf %138, %139 : vector<8x64xf32>
    %141 = vector.extract_strided_slice %132 {offsets = [0, 64], sizes = [8, 64], strides = [1, 1]} : vector<8x128xf32> to vector<8x64xf32>
    %142 = arith.mulf %141, %89 : vector<8x64xf32>
    %143 = vector.extract_strided_slice %132 {offsets = [0, 0], sizes = [8, 64], strides = [1, 1]} : vector<8x128xf32> to vector<8x64xf32>
    %144 = arith.mulf %143, %134 : vector<8x64xf32>
    %145 = arith.addf %142, %144 : vector<8x64xf32>
    %146 = math.tanh %145 : vector<8x64xf32>
    %147 = arith.mulf %140, %146 : vector<8x64xf32>
    %148 = arith.truncf %147 : vector<8x64xf32> to vector<8x64xbf16>
    %149 = tpu.concatenate %148, %118 in 1 : vector<8x64xbf16>, vector<8x64xbf16> -> vector<8x128xbf16>
    %cst_29 = arith.constant dense<0.000000e+00> : vector<8x256xf32>
    %150 = tpu.matmul %149, %3, %cst_29 {dimension_numbers = #tpu.dot_dimension_numbers<[1], [0], [0], [1], [0, 0, 1, 1], [], []>} : vector<8x128xbf16>, vector<128x256xbf16>, vector<8x256xf32> -> vector<8x256xf32>
    %151 = vector.broadcast %4 : vector<1x256xf32> to vector<8x256xf32>
    %152 = arith.addf %150, %151 : vector<8x256xf32>
    %153 = vector.extract_strided_slice %152 {offsets = [0, 0], sizes = [8, 128], strides = [1, 1]} : vector<8x256xf32> to vector<8x128xf32>
    %154 = arith.negf %153 : vector<8x128xf32>
    %155 = math.exp %154 : vector<8x128xf32>
    %cst_30 = arith.constant 1.000000e+00 : f32
    %156 = vector.broadcast %cst_30 : f32 to vector<8x128xf32>
    %157 = arith.addf %156, %155 : vector<8x128xf32>
    %158 = arith.divf %156, %157 : vector<8x128xf32>
    %159 = vector.extract_strided_slice %152 {offsets = [0, 128], sizes = [8, 64], strides = [1, 1]} : vector<8x256xf32> to vector<8x64xf32>
    %160 = math.tanh %159 : vector<8x64xf32>
    %161 = vector.extract_strided_slice %152 {offsets = [0, 192], sizes = [8, 64], strides = [1, 1]} : vector<8x256xf32> to vector<8x64xf32>
    %162 = arith.negf %161 : vector<8x64xf32>
    %163 = math.exp %162 : vector<8x64xf32>
    %cst_31 = arith.constant 1.000000e+00 : f32
    %164 = vector.broadcast %cst_31 : f32 to vector<8x64xf32>
    %165 = arith.addf %164, %163 : vector<8x64xf32>
    %166 = arith.divf %164, %165 : vector<8x64xf32>
    %167 = vector.extract_strided_slice %158 {offsets = [0, 64], sizes = [8, 64], strides = [1, 1]} : vector<8x128xf32> to vector<8x64xf32>
    %168 = arith.mulf %167, %115 : vector<8x64xf32>
    %169 = vector.extract_strided_slice %158 {offsets = [0, 0], sizes = [8, 64], strides = [1, 1]} : vector<8x128xf32> to vector<8x64xf32>
    %170 = arith.mulf %169, %160 : vector<8x64xf32>
    %171 = arith.addf %168, %170 : vector<8x64xf32>
    %172 = math.tanh %171 : vector<8x64xf32>
    %173 = arith.mulf %166, %172 : vector<8x64xf32>
    %174 = arith.truncf %173 : vector<8x64xf32> to vector<8x64xbf16>
    %c0_32 = arith.constant 0 : index
    %c3 = arith.constant 3 : index
    %175 = vector.load %arg1[%c0_32, %c3] : memref<8x8xf32, #tpu.memory_space<vmem>>, vector<8x1xf32>
    %176 = vector.broadcast %175 : vector<8x1xf32> to vector<8x256xf32>
    %177 = vector.broadcast %0 : vector<1x256xf32> to vector<8x256xf32>
    %178 = arith.mulf %176, %177 : vector<8x256xf32>
    %179 = vector.broadcast %1 : vector<1x256xf32> to vector<8x256xf32>
    %180 = arith.addf %178, %179 : vector<8x256xf32>
    %cst_33 = arith.constant dense<0.000000e+00> : vector<8x256xf32>
    %181 = tpu.matmul %148, %2, %cst_33 {dimension_numbers = #tpu.dot_dimension_numbers<[1], [0], [0], [1], [0, 0, 1, 1], [], []>} : vector<8x64xbf16>, vector<64x256xbf16>, vector<8x256xf32> -> vector<8x256xf32>
    %182 = arith.addf %180, %181 : vector<8x256xf32>
    %183 = vector.extract_strided_slice %182 {offsets = [0, 0], sizes = [8, 128], strides = [1, 1]} : vector<8x256xf32> to vector<8x128xf32>
    %184 = arith.negf %183 : vector<8x128xf32>
    %185 = math.exp %184 : vector<8x128xf32>
    %cst_34 = arith.constant 1.000000e+00 : f32
    %186 = vector.broadcast %cst_34 : f32 to vector<8x128xf32>
    %187 = arith.addf %186, %185 : vector<8x128xf32>
    %188 = arith.divf %186, %187 : vector<8x128xf32>
    %189 = vector.extract_strided_slice %182 {offsets = [0, 128], sizes = [8, 64], strides = [1, 1]} : vector<8x256xf32> to vector<8x64xf32>
    %190 = math.tanh %189 : vector<8x64xf32>
    %191 = vector.extract_strided_slice %182 {offsets = [0, 192], sizes = [8, 64], strides = [1, 1]} : vector<8x256xf32> to vector<8x64xf32>
    %192 = arith.negf %191 : vector<8x64xf32>
    %193 = math.exp %192 : vector<8x64xf32>
    %cst_35 = arith.constant 1.000000e+00 : f32
    %194 = vector.broadcast %cst_35 : f32 to vector<8x64xf32>
    %195 = arith.addf %194, %193 : vector<8x64xf32>
    %196 = arith.divf %194, %195 : vector<8x64xf32>
    %197 = vector.extract_strided_slice %188 {offsets = [0, 64], sizes = [8, 64], strides = [1, 1]} : vector<8x128xf32> to vector<8x64xf32>
    %198 = arith.mulf %197, %145 : vector<8x64xf32>
    %199 = vector.extract_strided_slice %188 {offsets = [0, 0], sizes = [8, 64], strides = [1, 1]} : vector<8x128xf32> to vector<8x64xf32>
    %200 = arith.mulf %199, %190 : vector<8x64xf32>
    %201 = arith.addf %198, %200 : vector<8x64xf32>
    %202 = math.tanh %201 : vector<8x64xf32>
    %203 = arith.mulf %196, %202 : vector<8x64xf32>
    %204 = arith.truncf %203 : vector<8x64xf32> to vector<8x64xbf16>
    %205 = tpu.concatenate %204, %174 in 1 : vector<8x64xbf16>, vector<8x64xbf16> -> vector<8x128xbf16>
    %cst_36 = arith.constant dense<0.000000e+00> : vector<8x256xf32>
    %206 = tpu.matmul %205, %3, %cst_36 {dimension_numbers = #tpu.dot_dimension_numbers<[1], [0], [0], [1], [0, 0, 1, 1], [], []>} : vector<8x128xbf16>, vector<128x256xbf16>, vector<8x256xf32> -> vector<8x256xf32>
    %207 = vector.broadcast %4 : vector<1x256xf32> to vector<8x256xf32>
    %208 = arith.addf %206, %207 : vector<8x256xf32>
    %209 = vector.extract_strided_slice %208 {offsets = [0, 0], sizes = [8, 128], strides = [1, 1]} : vector<8x256xf32> to vector<8x128xf32>
    %210 = arith.negf %209 : vector<8x128xf32>
    %211 = math.exp %210 : vector<8x128xf32>
    %cst_37 = arith.constant 1.000000e+00 : f32
    %212 = vector.broadcast %cst_37 : f32 to vector<8x128xf32>
    %213 = arith.addf %212, %211 : vector<8x128xf32>
    %214 = arith.divf %212, %213 : vector<8x128xf32>
    %215 = vector.extract_strided_slice %208 {offsets = [0, 128], sizes = [8, 64], strides = [1, 1]} : vector<8x256xf32> to vector<8x64xf32>
    %216 = math.tanh %215 : vector<8x64xf32>
    %217 = vector.extract_strided_slice %208 {offsets = [0, 192], sizes = [8, 64], strides = [1, 1]} : vector<8x256xf32> to vector<8x64xf32>
    %218 = arith.negf %217 : vector<8x64xf32>
    %219 = math.exp %218 : vector<8x64xf32>
    %cst_38 = arith.constant 1.000000e+00 : f32
    %220 = vector.broadcast %cst_38 : f32 to vector<8x64xf32>
    %221 = arith.addf %220, %219 : vector<8x64xf32>
    %222 = arith.divf %220, %221 : vector<8x64xf32>
    %223 = vector.extract_strided_slice %214 {offsets = [0, 64], sizes = [8, 64], strides = [1, 1]} : vector<8x128xf32> to vector<8x64xf32>
    %224 = arith.mulf %223, %171 : vector<8x64xf32>
    %225 = vector.extract_strided_slice %214 {offsets = [0, 0], sizes = [8, 64], strides = [1, 1]} : vector<8x128xf32> to vector<8x64xf32>
    %226 = arith.mulf %225, %216 : vector<8x64xf32>
    %227 = arith.addf %224, %226 : vector<8x64xf32>
    %228 = math.tanh %227 : vector<8x64xf32>
    %229 = arith.mulf %222, %228 : vector<8x64xf32>
    %230 = arith.truncf %229 : vector<8x64xf32> to vector<8x64xbf16>
    %c0_39 = arith.constant 0 : index
    %c4 = arith.constant 4 : index
    %231 = vector.load %arg1[%c0_39, %c4] : memref<8x8xf32, #tpu.memory_space<vmem>>, vector<8x1xf32>
    %232 = vector.broadcast %231 : vector<8x1xf32> to vector<8x256xf32>
    %233 = vector.broadcast %0 : vector<1x256xf32> to vector<8x256xf32>
    %234 = arith.mulf %232, %233 : vector<8x256xf32>
    %235 = vector.broadcast %1 : vector<1x256xf32> to vector<8x256xf32>
    %236 = arith.addf %234, %235 : vector<8x256xf32>
    %cst_40 = arith.constant dense<0.000000e+00> : vector<8x256xf32>
    %237 = tpu.matmul %204, %2, %cst_40 {dimension_numbers = #tpu.dot_dimension_numbers<[1], [0], [0], [1], [0, 0, 1, 1], [], []>} : vector<8x64xbf16>, vector<64x256xbf16>, vector<8x256xf32> -> vector<8x256xf32>
    %238 = arith.addf %236, %237 : vector<8x256xf32>
    %239 = vector.extract_strided_slice %238 {offsets = [0, 0], sizes = [8, 128], strides = [1, 1]} : vector<8x256xf32> to vector<8x128xf32>
    %240 = arith.negf %239 : vector<8x128xf32>
    %241 = math.exp %240 : vector<8x128xf32>
    %cst_41 = arith.constant 1.000000e+00 : f32
    %242 = vector.broadcast %cst_41 : f32 to vector<8x128xf32>
    %243 = arith.addf %242, %241 : vector<8x128xf32>
    %244 = arith.divf %242, %243 : vector<8x128xf32>
    %245 = vector.extract_strided_slice %238 {offsets = [0, 128], sizes = [8, 64], strides = [1, 1]} : vector<8x256xf32> to vector<8x64xf32>
    %246 = math.tanh %245 : vector<8x64xf32>
    %247 = vector.extract_strided_slice %238 {offsets = [0, 192], sizes = [8, 64], strides = [1, 1]} : vector<8x256xf32> to vector<8x64xf32>
    %248 = arith.negf %247 : vector<8x64xf32>
    %249 = math.exp %248 : vector<8x64xf32>
    %cst_42 = arith.constant 1.000000e+00 : f32
    %250 = vector.broadcast %cst_42 : f32 to vector<8x64xf32>
    %251 = arith.addf %250, %249 : vector<8x64xf32>
    %252 = arith.divf %250, %251 : vector<8x64xf32>
    %253 = vector.extract_strided_slice %244 {offsets = [0, 64], sizes = [8, 64], strides = [1, 1]} : vector<8x128xf32> to vector<8x64xf32>
    %254 = arith.mulf %253, %201 : vector<8x64xf32>
    %255 = vector.extract_strided_slice %244 {offsets = [0, 0], sizes = [8, 64], strides = [1, 1]} : vector<8x128xf32> to vector<8x64xf32>
    %256 = arith.mulf %255, %246 : vector<8x64xf32>
    %257 = arith.addf %254, %256 : vector<8x64xf32>
    %258 = math.tanh %257 : vector<8x64xf32>
    %259 = arith.mulf %252, %258 : vector<8x64xf32>
    %260 = arith.truncf %259 : vector<8x64xf32> to vector<8x64xbf16>
    %261 = tpu.concatenate %260, %230 in 1 : vector<8x64xbf16>, vector<8x64xbf16> -> vector<8x128xbf16>
    %cst_43 = arith.constant dense<0.000000e+00> : vector<8x256xf32>
    %262 = tpu.matmul %261, %3, %cst_43 {dimension_numbers = #tpu.dot_dimension_numbers<[1], [0], [0], [1], [0, 0, 1, 1], [], []>} : vector<8x128xbf16>, vector<128x256xbf16>, vector<8x256xf32> -> vector<8x256xf32>
    %263 = vector.broadcast %4 : vector<1x256xf32> to vector<8x256xf32>
    %264 = arith.addf %262, %263 : vector<8x256xf32>
    %265 = vector.extract_strided_slice %264 {offsets = [0, 0], sizes = [8, 128], strides = [1, 1]} : vector<8x256xf32> to vector<8x128xf32>
    %266 = arith.negf %265 : vector<8x128xf32>
    %267 = math.exp %266 : vector<8x128xf32>
    %cst_44 = arith.constant 1.000000e+00 : f32
    %268 = vector.broadcast %cst_44 : f32 to vector<8x128xf32>
    %269 = arith.addf %268, %267 : vector<8x128xf32>
    %270 = arith.divf %268, %269 : vector<8x128xf32>
    %271 = vector.extract_strided_slice %264 {offsets = [0, 128], sizes = [8, 64], strides = [1, 1]} : vector<8x256xf32> to vector<8x64xf32>
    %272 = math.tanh %271 : vector<8x64xf32>
    %273 = vector.extract_strided_slice %264 {offsets = [0, 192], sizes = [8, 64], strides = [1, 1]} : vector<8x256xf32> to vector<8x64xf32>
    %274 = arith.negf %273 : vector<8x64xf32>
    %275 = math.exp %274 : vector<8x64xf32>
    %cst_45 = arith.constant 1.000000e+00 : f32
    %276 = vector.broadcast %cst_45 : f32 to vector<8x64xf32>
    %277 = arith.addf %276, %275 : vector<8x64xf32>
    %278 = arith.divf %276, %277 : vector<8x64xf32>
    %279 = vector.extract_strided_slice %270 {offsets = [0, 64], sizes = [8, 64], strides = [1, 1]} : vector<8x128xf32> to vector<8x64xf32>
    %280 = arith.mulf %279, %227 : vector<8x64xf32>
    %281 = vector.extract_strided_slice %270 {offsets = [0, 0], sizes = [8, 64], strides = [1, 1]} : vector<8x128xf32> to vector<8x64xf32>
    %282 = arith.mulf %281, %272 : vector<8x64xf32>
    %283 = arith.addf %280, %282 : vector<8x64xf32>
    %284 = math.tanh %283 : vector<8x64xf32>
    %285 = arith.mulf %278, %284 : vector<8x64xf32>
    %286 = arith.truncf %285 : vector<8x64xf32> to vector<8x64xbf16>
    %c0_46 = arith.constant 0 : index
    %c5 = arith.constant 5 : index
    %287 = vector.load %arg1[%c0_46, %c5] : memref<8x8xf32, #tpu.memory_space<vmem>>, vector<8x1xf32>
    %288 = vector.broadcast %287 : vector<8x1xf32> to vector<8x256xf32>
    %289 = vector.broadcast %0 : vector<1x256xf32> to vector<8x256xf32>
    %290 = arith.mulf %288, %289 : vector<8x256xf32>
    %291 = vector.broadcast %1 : vector<1x256xf32> to vector<8x256xf32>
    %292 = arith.addf %290, %291 : vector<8x256xf32>
    %cst_47 = arith.constant dense<0.000000e+00> : vector<8x256xf32>
    %293 = tpu.matmul %260, %2, %cst_47 {dimension_numbers = #tpu.dot_dimension_numbers<[1], [0], [0], [1], [0, 0, 1, 1], [], []>} : vector<8x64xbf16>, vector<64x256xbf16>, vector<8x256xf32> -> vector<8x256xf32>
    %294 = arith.addf %292, %293 : vector<8x256xf32>
    %295 = vector.extract_strided_slice %294 {offsets = [0, 0], sizes = [8, 128], strides = [1, 1]} : vector<8x256xf32> to vector<8x128xf32>
    %296 = arith.negf %295 : vector<8x128xf32>
    %297 = math.exp %296 : vector<8x128xf32>
    %cst_48 = arith.constant 1.000000e+00 : f32
    %298 = vector.broadcast %cst_48 : f32 to vector<8x128xf32>
    %299 = arith.addf %298, %297 : vector<8x128xf32>
    %300 = arith.divf %298, %299 : vector<8x128xf32>
    %301 = vector.extract_strided_slice %294 {offsets = [0, 128], sizes = [8, 64], strides = [1, 1]} : vector<8x256xf32> to vector<8x64xf32>
    %302 = math.tanh %301 : vector<8x64xf32>
    %303 = vector.extract_strided_slice %294 {offsets = [0, 192], sizes = [8, 64], strides = [1, 1]} : vector<8x256xf32> to vector<8x64xf32>
    %304 = arith.negf %303 : vector<8x64xf32>
    %305 = math.exp %304 : vector<8x64xf32>
    %cst_49 = arith.constant 1.000000e+00 : f32
    %306 = vector.broadcast %cst_49 : f32 to vector<8x64xf32>
    %307 = arith.addf %306, %305 : vector<8x64xf32>
    %308 = arith.divf %306, %307 : vector<8x64xf32>
    %309 = vector.extract_strided_slice %300 {offsets = [0, 64], sizes = [8, 64], strides = [1, 1]} : vector<8x128xf32> to vector<8x64xf32>
    %310 = arith.mulf %309, %257 : vector<8x64xf32>
    %311 = vector.extract_strided_slice %300 {offsets = [0, 0], sizes = [8, 64], strides = [1, 1]} : vector<8x128xf32> to vector<8x64xf32>
    %312 = arith.mulf %311, %302 : vector<8x64xf32>
    %313 = arith.addf %310, %312 : vector<8x64xf32>
    %314 = math.tanh %313 : vector<8x64xf32>
    %315 = arith.mulf %308, %314 : vector<8x64xf32>
    %316 = arith.truncf %315 : vector<8x64xf32> to vector<8x64xbf16>
    %317 = tpu.concatenate %316, %286 in 1 : vector<8x64xbf16>, vector<8x64xbf16> -> vector<8x128xbf16>
    %cst_50 = arith.constant dense<0.000000e+00> : vector<8x256xf32>
    %318 = tpu.matmul %317, %3, %cst_50 {dimension_numbers = #tpu.dot_dimension_numbers<[1], [0], [0], [1], [0, 0, 1, 1], [], []>} : vector<8x128xbf16>, vector<128x256xbf16>, vector<8x256xf32> -> vector<8x256xf32>
    %319 = vector.broadcast %4 : vector<1x256xf32> to vector<8x256xf32>
    %320 = arith.addf %318, %319 : vector<8x256xf32>
    %321 = vector.extract_strided_slice %320 {offsets = [0, 0], sizes = [8, 128], strides = [1, 1]} : vector<8x256xf32> to vector<8x128xf32>
    %322 = arith.negf %321 : vector<8x128xf32>
    %323 = math.exp %322 : vector<8x128xf32>
    %cst_51 = arith.constant 1.000000e+00 : f32
    %324 = vector.broadcast %cst_51 : f32 to vector<8x128xf32>
    %325 = arith.addf %324, %323 : vector<8x128xf32>
    %326 = arith.divf %324, %325 : vector<8x128xf32>
    %327 = vector.extract_strided_slice %320 {offsets = [0, 128], sizes = [8, 64], strides = [1, 1]} : vector<8x256xf32> to vector<8x64xf32>
    %328 = math.tanh %327 : vector<8x64xf32>
    %329 = vector.extract_strided_slice %320 {offsets = [0, 192], sizes = [8, 64], strides = [1, 1]} : vector<8x256xf32> to vector<8x64xf32>
    %330 = arith.negf %329 : vector<8x64xf32>
    %331 = math.exp %330 : vector<8x64xf32>
    %cst_52 = arith.constant 1.000000e+00 : f32
    %332 = vector.broadcast %cst_52 : f32 to vector<8x64xf32>
    %333 = arith.addf %332, %331 : vector<8x64xf32>
    %334 = arith.divf %332, %333 : vector<8x64xf32>
    %335 = vector.extract_strided_slice %326 {offsets = [0, 64], sizes = [8, 64], strides = [1, 1]} : vector<8x128xf32> to vector<8x64xf32>
    %336 = arith.mulf %335, %283 : vector<8x64xf32>
    %337 = vector.extract_strided_slice %326 {offsets = [0, 0], sizes = [8, 64], strides = [1, 1]} : vector<8x128xf32> to vector<8x64xf32>
    %338 = arith.mulf %337, %328 : vector<8x64xf32>
    %339 = arith.addf %336, %338 : vector<8x64xf32>
    %340 = math.tanh %339 : vector<8x64xf32>
    %341 = arith.mulf %334, %340 : vector<8x64xf32>
    %342 = arith.truncf %341 : vector<8x64xf32> to vector<8x64xbf16>
    %c0_53 = arith.constant 0 : index
    %c6 = arith.constant 6 : index
    %343 = vector.load %arg1[%c0_53, %c6] : memref<8x8xf32, #tpu.memory_space<vmem>>, vector<8x1xf32>
    %344 = vector.broadcast %343 : vector<8x1xf32> to vector<8x256xf32>
    %345 = vector.broadcast %0 : vector<1x256xf32> to vector<8x256xf32>
    %346 = arith.mulf %344, %345 : vector<8x256xf32>
    %347 = vector.broadcast %1 : vector<1x256xf32> to vector<8x256xf32>
    %348 = arith.addf %346, %347 : vector<8x256xf32>
    %cst_54 = arith.constant dense<0.000000e+00> : vector<8x256xf32>
    %349 = tpu.matmul %316, %2, %cst_54 {dimension_numbers = #tpu.dot_dimension_numbers<[1], [0], [0], [1], [0, 0, 1, 1], [], []>} : vector<8x64xbf16>, vector<64x256xbf16>, vector<8x256xf32> -> vector<8x256xf32>
    %350 = arith.addf %348, %349 : vector<8x256xf32>
    %351 = vector.extract_strided_slice %350 {offsets = [0, 0], sizes = [8, 128], strides = [1, 1]} : vector<8x256xf32> to vector<8x128xf32>
    %352 = arith.negf %351 : vector<8x128xf32>
    %353 = math.exp %352 : vector<8x128xf32>
    %cst_55 = arith.constant 1.000000e+00 : f32
    %354 = vector.broadcast %cst_55 : f32 to vector<8x128xf32>
    %355 = arith.addf %354, %353 : vector<8x128xf32>
    %356 = arith.divf %354, %355 : vector<8x128xf32>
    %357 = vector.extract_strided_slice %350 {offsets = [0, 128], sizes = [8, 64], strides = [1, 1]} : vector<8x256xf32> to vector<8x64xf32>
    %358 = math.tanh %357 : vector<8x64xf32>
    %359 = vector.extract_strided_slice %350 {offsets = [0, 192], sizes = [8, 64], strides = [1, 1]} : vector<8x256xf32> to vector<8x64xf32>
    %360 = arith.negf %359 : vector<8x64xf32>
    %361 = math.exp %360 : vector<8x64xf32>
    %cst_56 = arith.constant 1.000000e+00 : f32
    %362 = vector.broadcast %cst_56 : f32 to vector<8x64xf32>
    %363 = arith.addf %362, %361 : vector<8x64xf32>
    %364 = arith.divf %362, %363 : vector<8x64xf32>
    %365 = vector.extract_strided_slice %356 {offsets = [0, 64], sizes = [8, 64], strides = [1, 1]} : vector<8x128xf32> to vector<8x64xf32>
    %366 = arith.mulf %365, %313 : vector<8x64xf32>
    %367 = vector.extract_strided_slice %356 {offsets = [0, 0], sizes = [8, 64], strides = [1, 1]} : vector<8x128xf32> to vector<8x64xf32>
    %368 = arith.mulf %367, %358 : vector<8x64xf32>
    %369 = arith.addf %366, %368 : vector<8x64xf32>
    %370 = math.tanh %369 : vector<8x64xf32>
    %371 = arith.mulf %364, %370 : vector<8x64xf32>
    %372 = arith.truncf %371 : vector<8x64xf32> to vector<8x64xbf16>
    %373 = tpu.concatenate %372, %342 in 1 : vector<8x64xbf16>, vector<8x64xbf16> -> vector<8x128xbf16>
    %cst_57 = arith.constant dense<0.000000e+00> : vector<8x256xf32>
    %374 = tpu.matmul %373, %3, %cst_57 {dimension_numbers = #tpu.dot_dimension_numbers<[1], [0], [0], [1], [0, 0, 1, 1], [], []>} : vector<8x128xbf16>, vector<128x256xbf16>, vector<8x256xf32> -> vector<8x256xf32>
    %375 = vector.broadcast %4 : vector<1x256xf32> to vector<8x256xf32>
    %376 = arith.addf %374, %375 : vector<8x256xf32>
    %377 = vector.extract_strided_slice %376 {offsets = [0, 0], sizes = [8, 128], strides = [1, 1]} : vector<8x256xf32> to vector<8x128xf32>
    %378 = arith.negf %377 : vector<8x128xf32>
    %379 = math.exp %378 : vector<8x128xf32>
    %cst_58 = arith.constant 1.000000e+00 : f32
    %380 = vector.broadcast %cst_58 : f32 to vector<8x128xf32>
    %381 = arith.addf %380, %379 : vector<8x128xf32>
    %382 = arith.divf %380, %381 : vector<8x128xf32>
    %383 = vector.extract_strided_slice %376 {offsets = [0, 128], sizes = [8, 64], strides = [1, 1]} : vector<8x256xf32> to vector<8x64xf32>
    %384 = math.tanh %383 : vector<8x64xf32>
    %385 = vector.extract_strided_slice %376 {offsets = [0, 192], sizes = [8, 64], strides = [1, 1]} : vector<8x256xf32> to vector<8x64xf32>
    %386 = arith.negf %385 : vector<8x64xf32>
    %387 = math.exp %386 : vector<8x64xf32>
    %cst_59 = arith.constant 1.000000e+00 : f32
    %388 = vector.broadcast %cst_59 : f32 to vector<8x64xf32>
    %389 = arith.addf %388, %387 : vector<8x64xf32>
    %390 = arith.divf %388, %389 : vector<8x64xf32>
    %391 = vector.extract_strided_slice %382 {offsets = [0, 64], sizes = [8, 64], strides = [1, 1]} : vector<8x128xf32> to vector<8x64xf32>
    %392 = arith.mulf %391, %339 : vector<8x64xf32>
    %393 = vector.extract_strided_slice %382 {offsets = [0, 0], sizes = [8, 64], strides = [1, 1]} : vector<8x128xf32> to vector<8x64xf32>
    %394 = arith.mulf %393, %384 : vector<8x64xf32>
    %395 = arith.addf %392, %394 : vector<8x64xf32>
    %396 = math.tanh %395 : vector<8x64xf32>
    %397 = arith.mulf %390, %396 : vector<8x64xf32>
    %398 = arith.truncf %397 : vector<8x64xf32> to vector<8x64xbf16>
    %c0_60 = arith.constant 0 : index
    %c7 = arith.constant 7 : index
    %399 = vector.load %arg1[%c0_60, %c7] : memref<8x8xf32, #tpu.memory_space<vmem>>, vector<8x1xf32>
    %400 = vector.broadcast %399 : vector<8x1xf32> to vector<8x256xf32>
    %401 = vector.broadcast %0 : vector<1x256xf32> to vector<8x256xf32>
    %402 = arith.mulf %400, %401 : vector<8x256xf32>
    %403 = vector.broadcast %1 : vector<1x256xf32> to vector<8x256xf32>
    %404 = arith.addf %402, %403 : vector<8x256xf32>
    %cst_61 = arith.constant dense<0.000000e+00> : vector<8x256xf32>
    %405 = tpu.matmul %372, %2, %cst_61 {dimension_numbers = #tpu.dot_dimension_numbers<[1], [0], [0], [1], [0, 0, 1, 1], [], []>} : vector<8x64xbf16>, vector<64x256xbf16>, vector<8x256xf32> -> vector<8x256xf32>
    %406 = arith.addf %404, %405 : vector<8x256xf32>
    %407 = vector.extract_strided_slice %406 {offsets = [0, 0], sizes = [8, 128], strides = [1, 1]} : vector<8x256xf32> to vector<8x128xf32>
    %408 = arith.negf %407 : vector<8x128xf32>
    %409 = math.exp %408 : vector<8x128xf32>
    %cst_62 = arith.constant 1.000000e+00 : f32
    %410 = vector.broadcast %cst_62 : f32 to vector<8x128xf32>
    %411 = arith.addf %410, %409 : vector<8x128xf32>
    %412 = arith.divf %410, %411 : vector<8x128xf32>
    %413 = vector.extract_strided_slice %406 {offsets = [0, 128], sizes = [8, 64], strides = [1, 1]} : vector<8x256xf32> to vector<8x64xf32>
    %414 = math.tanh %413 : vector<8x64xf32>
    %415 = vector.extract_strided_slice %406 {offsets = [0, 192], sizes = [8, 64], strides = [1, 1]} : vector<8x256xf32> to vector<8x64xf32>
    %416 = arith.negf %415 : vector<8x64xf32>
    %417 = math.exp %416 : vector<8x64xf32>
    %cst_63 = arith.constant 1.000000e+00 : f32
    %418 = vector.broadcast %cst_63 : f32 to vector<8x64xf32>
    %419 = arith.addf %418, %417 : vector<8x64xf32>
    %420 = arith.divf %418, %419 : vector<8x64xf32>
    %421 = vector.extract_strided_slice %412 {offsets = [0, 64], sizes = [8, 64], strides = [1, 1]} : vector<8x128xf32> to vector<8x64xf32>
    %422 = arith.mulf %421, %369 : vector<8x64xf32>
    %423 = vector.extract_strided_slice %412 {offsets = [0, 0], sizes = [8, 64], strides = [1, 1]} : vector<8x128xf32> to vector<8x64xf32>
    %424 = arith.mulf %423, %414 : vector<8x64xf32>
    %425 = arith.addf %422, %424 : vector<8x64xf32>
    %426 = math.tanh %425 : vector<8x64xf32>
    %427 = arith.mulf %420, %426 : vector<8x64xf32>
    %428 = arith.truncf %427 : vector<8x64xf32> to vector<8x64xbf16>
    %429 = tpu.concatenate %428, %398 in 1 : vector<8x64xbf16>, vector<8x64xbf16> -> vector<8x128xbf16>
    %cst_64 = arith.constant dense<0.000000e+00> : vector<8x256xf32>
    %430 = tpu.matmul %429, %3, %cst_64 {dimension_numbers = #tpu.dot_dimension_numbers<[1], [0], [0], [1], [0, 0, 1, 1], [], []>} : vector<8x128xbf16>, vector<128x256xbf16>, vector<8x256xf32> -> vector<8x256xf32>
    %431 = vector.broadcast %4 : vector<1x256xf32> to vector<8x256xf32>
    %432 = arith.addf %430, %431 : vector<8x256xf32>
    %433 = vector.extract_strided_slice %432 {offsets = [0, 0], sizes = [8, 128], strides = [1, 1]} : vector<8x256xf32> to vector<8x128xf32>
    %434 = arith.negf %433 : vector<8x128xf32>
    %435 = math.exp %434 : vector<8x128xf32>
    %cst_65 = arith.constant 1.000000e+00 : f32
    %436 = vector.broadcast %cst_65 : f32 to vector<8x128xf32>
    %437 = arith.addf %436, %435 : vector<8x128xf32>
    %438 = arith.divf %436, %437 : vector<8x128xf32>
    %439 = vector.extract_strided_slice %432 {offsets = [0, 128], sizes = [8, 64], strides = [1, 1]} : vector<8x256xf32> to vector<8x64xf32>
    %440 = math.tanh %439 : vector<8x64xf32>
    %441 = vector.extract_strided_slice %432 {offsets = [0, 192], sizes = [8, 64], strides = [1, 1]} : vector<8x256xf32> to vector<8x64xf32>
    %442 = arith.negf %441 : vector<8x64xf32>
    %443 = math.exp %442 : vector<8x64xf32>
    %cst_66 = arith.constant 1.000000e+00 : f32
    %444 = vector.broadcast %cst_66 : f32 to vector<8x64xf32>
    %445 = arith.addf %444, %443 : vector<8x64xf32>
    %446 = arith.divf %444, %445 : vector<8x64xf32>
    %447 = vector.extract_strided_slice %438 {offsets = [0, 64], sizes = [8, 64], strides = [1, 1]} : vector<8x128xf32> to vector<8x64xf32>
    %448 = arith.mulf %447, %395 : vector<8x64xf32>
    %449 = vector.extract_strided_slice %438 {offsets = [0, 0], sizes = [8, 64], strides = [1, 1]} : vector<8x128xf32> to vector<8x64xf32>
    %450 = arith.mulf %449, %440 : vector<8x64xf32>
    %451 = arith.addf %448, %450 : vector<8x64xf32>
    %452 = math.tanh %451 : vector<8x64xf32>
    %453 = arith.mulf %446, %452 : vector<8x64xf32>
    %454 = arith.truncf %453 : vector<8x64xf32> to vector<8x64xbf16>
    %c0_67 = arith.constant 0 : index
    %c0_68 = arith.constant 0 : index
    %455 = vector.load %arg7[%c0_67, %c0_68] : memref<64x128xbf16, #tpu.memory_space<vmem>>, vector<64x128xbf16>
    %cst_69 = arith.constant dense<0.000000e+00> : vector<8x128xf32>
    %456 = tpu.matmul %454, %455, %cst_69 {dimension_numbers = #tpu.dot_dimension_numbers<[1], [0], [0], [1], [0, 0, 1, 1], [], []>} : vector<8x64xbf16>, vector<64x128xbf16>, vector<8x128xf32> -> vector<8x128xf32>
    %c0_70 = arith.constant 0 : index
    %c0_71 = arith.constant 0 : index
    %457 = vector.load %arg8[%c0_70, %c0_71] : memref<1x128xf32, #tpu.memory_space<vmem>>, vector<1x128xf32>
    %458 = vector.broadcast %457 : vector<1x128xf32> to vector<8x128xf32>
    %459 = arith.addf %456, %458 : vector<8x128xf32>
    %c0_72 = arith.constant 0 : index
    %c0_73 = arith.constant 0 : index
    %460 = vector.load %arg9[%c0_72, %c0_73] : memref<8x128xf32, #tpu.memory_space<vmem>>, vector<8x128xf32>
    tpu.vector_store %arg9[%c0_72, %c0_73], %459 {strides = array<i32>} : memref<8x128xf32, #tpu.memory_space<vmem>>, vector<8x128xf32>,
    return
  }
  func.func @transform_0(%arg0: i32) -> (i32, i32) {
    %c0_i32 = arith.constant 0 : i32
    %c0_i32_0 = arith.constant 0 : i32
    return %arg0, %c0_i32 : i32, i32
  }
  func.func @transform_1(%arg0: i32) -> (i32, i32) {
    %c0_i32 = arith.constant 0 : i32
    %c0_i32_0 = arith.constant 0 : i32
    %c0_i32_1 = arith.constant 0 : i32
    return %c0_i32, %c0_i32_0 : i32, i32
  }
  func.func @transform_2(%arg0: i32) -> (i32, i32) {
    %c0_i32 = arith.constant 0 : i32
    %c0_i32_0 = arith.constant 0 : i32
    %c0_i32_1 = arith.constant 0 : i32
    return %c0_i32, %c0_i32_0 : i32, i32
  }
  func.func @transform_3(%arg0: i32) -> (i32, i32) {
    %c0_i32 = arith.constant 0 : i32
    %c0_i32_0 = arith.constant 0 : i32
    %c0_i32_1 = arith.constant 0 : i32
    return %c0_i32, %c0_i32_0 : i32, i32
  }
  func.func @transform_4(%arg0: i32) -> (i32, i32) {
    %c0_i32 = arith.constant 0 : i32
    %c0_i32_0 = arith.constant 0 : i32
    %c0_i32_1 = arith.constant 0 : i32
    return %c0_i32, %c0_i32_0 : i32, i32
  }
  func.func @transform_5(%arg0: i32) -> (i32, i32) {
    %c0_i32 = arith.constant 0 : i32
    %c0_i32_0 = arith.constant 0 : i32
    %c0_i32_1 = arith.constant 0 : i32
    return %c0_i32, %c0_i32_0 : i32, i32
  }
  func.func @transform_6(%arg0: i32) -> (i32, i32) {
    %c0_i32 = arith.constant 0 : i32
    %c0_i32_0 = arith.constant 0 : i32
    %c0_i32_1 = arith.constant 0 : i32
    return %c0_i32, %c0_i32_0 : i32, i32
  }
  func.func @transform_7(%arg0: i32) -> (i32, i32) {
    %c0_i32 = arith.constant 0 : i32
    %c0_i32_0 = arith.constant 0 : i32
    %c0_i32_1 = arith.constant 0 : i32
    return %c0_i32, %c0_i32_0 : i32, i32
  }
  func.func @transform_8(%arg0: i32) -> (i32, i32) {
    %c0_i32 = arith.constant 0 : i32
    %c0_i32_0 = arith.constant 0 : i32
    return %arg0, %c0_i32 : i32, i32
  }
}

</mosaic_0001>

<llo_original>
// kernel: tpu_custom_call.1
$region0: #{tpu_custom_call.1}
  #allocation0 [shape = 'u32[]', space=smem, size = 0x4, offset = 0x4, fixed_abs, tag = 'smem constant byte address 0x4 - core index']
  #allocation1 [shape = 'u32[144,128]{1,0:T(1,128)}', space=vmem, size = 0x12000, scoped, tag = 'internal scratch']
  %s0 = inlined_call_operand.hbm [shape: f32[8,8], index: 0, kind: input, shape index: {}]
  %s1 = inlined_call_operand.vmem [shape: f32[1,256], index: 1, kind: input, shape index: {}]
  %s2 = inlined_call_operand.vmem [shape: f32[1,256], index: 2, kind: input, shape index: {}]
  %s3 = inlined_call_operand.hbm [shape: bf16[64,256], index: 3, kind: input, shape index: {}]
  %s4 = inlined_call_operand.hbm [shape: bf16[128,256], index: 4, kind: input, shape index: {}]
  %s5 = inlined_call_operand.vmem [shape: f32[1,256], index: 5, kind: input, shape index: {}]
  %s6 = inlined_call_operand.hbm [shape: bf16[64,128], index: 6, kind: input, shape index: {}]
  %s7 = inlined_call_operand.vmem [shape: f32[1,128], index: 7, kind: input, shape index: {}]
  %s8 = inlined_call_operand.hbm [shape: f32[8,128], index: 8, kind: output, shape index: {}]
  %s9 = sld [smem:[#allocation0]]
  $region58: #{tpu_custom_call.1} parent=0
    _
  %s11 = ssub.s32 1, %s9
  %s12 = scalar_select 0, %s11, %s9
  $region1: #{tpu_custom_call.1} parent=0
    #allocation2 [shape = 'u8[4096]{0}', space=vmem, size = 0x1000, scoped, tag = 'input window, operand 0, single buffered']
    #allocation3 [shape = 's32[1]{0}', space=sflag, size = 0x4, scoped, tag = 'scoped memory for tpu_custom_call.1']
    #allocation4 [shape = 's32[1]{0}', space=sflag, size = 0x4, scoped, tag = 'scoped memory for tpu_custom_call.1']
    #allocation5 [shape = 'u8[32768]{0}', space=vmem, size = 0x8000, scoped, tag = 'input window, operand 3, single buffered']
    #allocation6 [shape = 's32[1]{0}', space=sflag, size = 0x4, scoped, tag = 'scoped memory for tpu_custom_call.1']
    #allocation7 [shape = 'u8[65536]{0}', space=vmem, size = 0x10000, scoped, tag = 'input window, operand 4, single buffered']
    #allocation8 [shape = 'u8[16384]{0}', space=vmem, size = 0x4000, scoped, tag = 'input window, operand 6, single buffered']
    #allocation9 [shape = 's32[1]{0}', space=sflag, size = 0x4, scoped, tag = 'scoped memory for tpu_custom_call.1']
    #allocation10 [shape = 'u8[4096]{0}', space=vmem, size = 0x1000, scoped, tag = 'output window, operand 0, single buffered']
    %13 = vsyncpa [#allocation3], 0
    %14 = vsyncpa [#allocation6], 0
    %15 = vsyncpa [#allocation9], 0
    %16 = vsyncpa [#allocation4], 0
    // Predicated region
    $region2: #{tpu_custom_call.1} parent=1 // pred_check
      _
    $region3: #{tpu_custom_call.1} parent=1 // pred_check_branch
      %18 = sbr.rel (0) target = $region5
    $region4: #{tpu_custom_call.1} parent=1 // pred_region
      %s20 = ssub.s32 128, 128
      %21 = vsyncadd [#allocation3], %s20
      %s23 = sshll.u32 [#allocation2], 4
      %s24 = int_to_ptr.vmem [resolvable:$true] %s23
      %26 = dma.hbm_to_vmem [thread:$0]  %s0, 128, %s24, [#allocation3]
    $region5: #{tpu_custom_call.1} parent=1 // pred_fallthru
      _
    // Predicated region
    $region6: #{tpu_custom_call.1} parent=1 // pred_check
      _
    $region7: #{tpu_custom_call.1} parent=1 // pred_check_branch
      %28 = sbr.rel (0) target = $region9
    $region8: #{tpu_custom_call.1} parent=1 // pred_region
      _
    $region9: #{tpu_custom_call.1} parent=1 // pred_fallthru
      _
    // Predicated region
    $region10: #{tpu_custom_call.1} parent=1 // pred_check
      _
    $region11: #{tpu_custom_call.1} parent=1 // pred_check_branch
      %30 = sbr.rel (0) target = $region13
    $region12: #{tpu_custom_call.1} parent=1 // pred_region
      _
    $region13: #{tpu_custom_call.1} parent=1 // pred_fallthru
      _
    // Predicated region
    $region14: #{tpu_custom_call.1} parent=1 // pred_check
      _
    $region15: #{tpu_custom_call.1} parent=1 // pred_check_branch
      %32 = sbr.rel (0) target = $region17
    $region16: #{tpu_custom_call.1} parent=1 // pred_region
      %s34 = ssub.s32 1024, 1024
      %35 = vsyncadd [#allocation6], %s34
      %s36 = sshll.u32 [#allocation5], 4
      %s37 = int_to_ptr.vmem [resolvable:$true] %s36
      %42 = dma.hbm_to_vmem [thread:$0]  %s3, 1024, %s37, [#allocation6], 128, 128, 8
    $region17: #{tpu_custom_call.1} parent=1 // pred_fallthru
      _
    // Predicated region
    $region18: #{tpu_custom_call.1} parent=1 // pred_check
      _
    $region19: #{tpu_custom_call.1} parent=1 // pred_check_branch
      %44 = sbr.rel (0) target = $region21
    $region20: #{tpu_custom_call.1} parent=1 // pred_region
      %s46 = ssub.s32 2048, 2048
      %47 = vsyncadd [#allocation6], %s46
      %s48 = sshll.u32 [#allocation7], 4
      %s49 = int_to_ptr.vmem [resolvable:$true] %s48
      %54 = dma.hbm_to_vmem [thread:$0]  %s4, 2048, %s49, [#allocation6], 128, 128, 8
    $region21: #{tpu_custom_call.1} parent=1 // pred_fallthru
      _
    // Predicated region
    $region22: #{tpu_custom_call.1} parent=1 // pred_check
      _
    $region23: #{tpu_custom_call.1} parent=1 // pred_check_branch
      %56 = sbr.rel (0) target = $region25
    $region24: #{tpu_custom_call.1} parent=1 // pred_region
      _
    $region25: #{tpu_custom_call.1} parent=1 // pred_fallthru
      _
    // Predicated region
    $region26: #{tpu_custom_call.1} parent=1 // pred_check
      _
    $region27: #{tpu_custom_call.1} parent=1 // pred_check_branch
      %58 = sbr.rel (0) target = $region29
    $region28: #{tpu_custom_call.1} parent=1 // pred_region
      %s60 = ssub.s32 512, 512
      %61 = vsyncadd [#allocation9], %s60
      %s62 = sshll.u32 [#allocation8], 4
      %s63 = int_to_ptr.vmem [resolvable:$true] %s62
      %68 = dma.hbm_to_vmem [thread:$0]  %s6, 512, %s63, [#allocation9], 64, 64, 4
    $region29: #{tpu_custom_call.1} parent=1 // pred_fallthru
      _
    // Predicated region
    $region30: #{tpu_custom_call.1} parent=1 // pred_check
      _
    $region31: #{tpu_custom_call.1} parent=1 // pred_check_branch
      %70 = sbr.rel (0) target = $region33
    $region32: #{tpu_custom_call.1} parent=1 // pred_region
      _
    $region33: #{tpu_custom_call.1} parent=1 // pred_fallthru
      _
    // Predicated region
    $region34: #{tpu_custom_call.1} parent=1 // pred_check
      _
    $region35: #{tpu_custom_call.1} parent=1 // pred_check_branch
      %72 = sbr.rel (0) target = $region37
    $region36: #{tpu_custom_call.1} parent=1 // pred_region
      %73 = dma.done [#allocation3], 128
    $region37: #{tpu_custom_call.1} parent=1 // pred_fallthru
      _
    // Predicated region
    $region38: #{tpu_custom_call.1} parent=1 // pred_check
      _
    $region39: #{tpu_custom_call.1} parent=1 // pred_check_branch
      %75 = sbr.rel (0) target = $region41
    $region40: #{tpu_custom_call.1} parent=1 // pred_region
      %76 = dma.done [#allocation6], 1024
    $region41: #{tpu_custom_call.1} parent=1 // pred_fallthru
      _
    // Predicated region
    $region42: #{tpu_custom_call.1} parent=1 // pred_check
      _
    $region43: #{tpu_custom_call.1} parent=1 // pred_check_branch
      %78 = sbr.rel (0) target = $region45
    $region44: #{tpu_custom_call.1} parent=1 // pred_region
      %79 = dma.done [#allocation6], 2048
    $region45: #{tpu_custom_call.1} parent=1 // pred_fallthru
      _
    // Predicated region
    $region46: #{tpu_custom_call.1} parent=1 // pred_check
      _
    $region47: #{tpu_custom_call.1} parent=1 // pred_check_branch
      %81 = sbr.rel (0) target = $region49
    $region48: #{tpu_custom_call.1} parent=1 // pred_region
      %82 = dma.done [#allocation9], 512
    $region49: #{tpu_custom_call.1} parent=1 // pred_fallthru
      _
    %v84 = vld [vmem:[%s1] sm:$0x3]
    %v85 = vld [vmem:[%s2] sm:$0x3]
    %v86 = vld [vmem:[#allocation5] sm:$0xff]
    %v87 = vld [vmem:[#allocation5 + $0x8] sm:$0xff]
    %v88 = vld [vmem:[#allocation5 + $0x10] sm:$0xff]
    %v89 = vld [vmem:[#allocation5 + $0x18] sm:$0xff]
    %v90 = vld [vmem:[#allocation5 + $0x20] sm:$0xff]
    %v91 = vld [vmem:[#allocation5 + $0x28] sm:$0xff]
    %v92 = vld [vmem:[#allocation5 + $0x30] sm:$0xff]
    %v93 = vld [vmem:[#allocation5 + $0x38] sm:$0xff]
    %v94 = vld [vmem:[#allocation7] sm:$0xff]
    %v95 = vld [vmem:[#allocation7 + $0x8] sm:$0xff]
    %v96 = vld [vmem:[#allocation7 + $0x10] sm:$0xff]
    %v97 = vld [vmem:[#allocation7 + $0x18] sm:$0xff]
    %v98 = vld [vmem:[#allocation7 + $0x20] sm:$0xff]
    %v99 = vld [vmem:[#allocation7 + $0x28] sm:$0xff]
    %v100 = vld [vmem:[#allocation7 + $0x30] sm:$0xff]
    %v101 = vld [vmem:[#allocation7 + $0x38] sm:$0xff]
    %v102 = vld [vmem:[#allocation7 + $0x40] sm:$0xff]
    %v103 = vld [vmem:[#allocation7 + $0x48] sm:$0xff]
    %v104 = vld [vmem:[#allocation7 + $0x50] sm:$0xff]
    %v105 = vld [vmem:[#allocation7 + $0x58] sm:$0xff]
    %v106 = vld [vmem:[#allocation7 + $0x60] sm:$0xff]
    %v107 = vld [vmem:[#allocation7 + $0x68] sm:$0xff]
    %v108 = vld [vmem:[#allocation7 + $0x70] sm:$0xff]
    %v109 = vld [vmem:[#allocation7 + $0x78] sm:$0xff]
    %v110 = vld [vmem:[%s5] sm:$0x3]
    %v111 = vld [vmem:[#allocation2] sm:$0xff]
    %113 = vset.pattern.permute.xlu0 0
    %114 = vperm.xlu0 %113, %v111
    %v115 = vpop.permute.xlu0 %114
    %v118 = vlaneseq
    %v119 = vshrl.u32 %v118, 7
    %v120 = vsub.s32 0, %v119
    %v121 = vrot.slane %v84, %v120
    %v122 = vlaneseq
    %v123 = vshrl.u32 %v122, 7
    %v124 = vsub.s32 1, %v123
    %v125 = vrot.slane %v84, %v124
    %v128 = vmul.f32 %v115, %v121
    %v129 = vmul.f32 %v115, %v125
    %v131 = vlaneseq
    %v132 = vshrl.u32 %v131, 7
    %v133 = vsub.s32 0, %v132
    %v134 = vrot.slane %v85, %v133
    %v135 = vlaneseq
    %v136 = vshrl.u32 %v135, 7
    %v137 = vsub.s32 1, %v136
    %v138 = vrot.slane %v85, %v137
    %v141 = vadd.f32 %v128, %v134
    %v142 = vadd.f32 %v129, %v138
    %v151 = vunpack.c.l.b16 %v86
    %v152 = vunpack.c.h.b16 %v86
    %v153 = vunpack.c.l.b16 %v87
    %v154 = vunpack.c.h.b16 %v87
    %v155 = vunpack.c.l.b16 %v88
    %v156 = vunpack.c.h.b16 %v88
    %v157 = vunpack.c.l.b16 %v89
    %v158 = vunpack.c.h.b16 %v89
    %v159 = vunpack.c.l.b16 %v90
    %v160 = vunpack.c.h.b16 %v90
    %v161 = vunpack.c.l.b16 %v91
    %v162 = vunpack.c.h.b16 %v91
    %v163 = vunpack.c.l.b16 %v92
    %v164 = vunpack.c.h.b16 %v92
    %v165 = vunpack.c.l.b16 %v93
    %v166 = vunpack.c.h.b16 %v93
    %v167 = vpack.c.b16 %v153, %v151
    %v168 = vpack.c.b16 %v154, %v152
    %v169 = vpack.c.b16 %v157, %v155
    %v170 = vpack.c.b16 %v158, %v156
    %v171 = vpack.c.b16 %v161, %v159
    %v172 = vpack.c.b16 %v162, %v160
    %v173 = vpack.c.b16 %v165, %v163
    %v174 = vpack.c.b16 %v166, %v164
    %vm183 = vcmask 523264
    %v185 = vsel %vm183, 0, 0
    %187 = vmatprep.subr.bf16.mxu0 %v168
    %188 = vmatpush1.bf16.msra.mxu0 %v167
    %189 = vmatprep.subr.bf16.mxu0 %v170
    %190 = vmatpush1.bf16.msra.mxu0 %v169
    %191 = vmatprep.subr.bf16.mxu0 %v172
    %192 = vmatpush1.bf16.msra.mxu0 %v171
    %193 = vmatprep.subr.bf16.mxu0 %v174
    %194 = vmatpush1.bf16.msra.mxu0 %v173
    %195 = vmatprep.subr.bf16.mxu0 0
    %196 = vmatpush1.bf16.msra.mxu0 0
    %197 = vmatprep.subr.bf16.mxu0 0
    %198 = vmatpush1.bf16.msra.mxu0 0
    %199 = vmatprep.subr.bf16.mxu0 0
    %200 = vmatpush1.bf16.msra.mxu0 0
    %201 = vmatprep.subr.bf16.mxu0 0
    %202 = vmatpush1.bf16.msra.mxu0 0
    %203 = vmatprep.subr.bf16.mxu0 0
    %204 = vmatpush1.bf16.msra.mxu0 0
    %205 = vmatprep.subr.bf16.mxu0 0
    %206 = vmatpush1.bf16.msra.mxu0 0
    %207 = vmatprep.subr.bf16.mxu0 0
    %208 = vmatpush1.bf16.msra.mxu0 0
    %209 = vmatprep.subr.bf16.mxu0 0
    %210 = vmatpush1.bf16.msra.mxu0 0
    %211 = vmatprep.subr.bf16.mxu0 0
    %212 = vmatpush1.bf16.msra.mxu0 0
    %213 = vmatprep.subr.bf16.mxu0 0
    %214 = vmatpush1.bf16.msra.mxu0 0
    %215 = vmatprep.subr.bf16.mxu0 0
    %216 = vmatpush1.bf16.msra.mxu0 0
    %217 = vmatprep.subr.bf16.mxu0 0
    %218 = vmatpush1.bf16.msra.mxu0 0
    %219 = vmatprep.mubr.bf16.mxu0 0
    %220 = vmatmul.mubr.bf16.gmra.mrb[0].mxu0 %v185
    %v221 = vpop.f32.mrb[0].mxu0
    %v222 = vadd.f32 0.0, %v221
    %v223 = vpop.f32.mrb[0].mxu0
    %v224 = vadd.f32 0.0, %v223
    %v225 = vpop.f32.mrb[0].mxu0
    %v226 = vpop.f32.mrb[0].mxu0
    %227 = vdwg.mxu0
    %v228 = vadd.f32 %v141, %v222
    %v229 = vadd.f32 %v142, %v224
    %v230 = vxor.u32 %v228, 2147483648
    %v231 = vmul.f32 %v230, 1.442695
    %v232 = vpow.pop %v231
    %v233 = vadd.f32 %v232, 1.0
    %v234 = vrcp.pop %v233
    %v235 = vmul.f32 1.0, %v234
    %v236 = vtanh.pop %v229
    %v237 = vxor.u32 %v229, 2147483648
    %v238 = vmul.f32 %v237, 1.442695
    %v239 = vpow.pop %v238
    %v240 = vadd.f32 %v239, 1.0
    %v241 = vrcp.pop %v240
    %v242 = vmul.f32 1.0, %v241
    %v243 = vmul.f32 %v235, 0.0
    %v244 = vmul.f32 %v235, %v236
    %246 = vrot.lane.b32.xlu0 %v244, 64
    %v247 = vpop.permute.xlu0 %246
    %v249 = vadd.f32 %v243, %v247
    %v250 = vtanh.pop %v249
    %v251 = vmul.f32 %v242, %v250
    %v252 = vpack.c.bf16 %v251, %v251
    %254 = vrot.lane.b32.xlu0 %v252, 64
    %v255 = vpop.permute.xlu0 %254
    %v257 = vsel %vm183, %v255, 0
    %v260 = vlaneseq
    %v261 = vshrl.u32 %v260, 7
    %v262 = vsub.s32 0, %v261
    %v263 = vrot.slane %v110, %v262
    %v264 = vlaneseq
    %v265 = vshrl.u32 %v264, 7
    %v266 = vsub.s32 1, %v265
    %v267 = vrot.slane %v110, %v266
    %v286 = vunpack.c.l.b16 %v94
    %v287 = vunpack.c.h.b16 %v94
    %v288 = vunpack.c.l.b16 %v95
    %v289 = vunpack.c.h.b16 %v95
    %v290 = vunpack.c.l.b16 %v96
    %v291 = vunpack.c.h.b16 %v96
    %v292 = vunpack.c.l.b16 %v97
    %v293 = vunpack.c.h.b16 %v97
    %v294 = vunpack.c.l.b16 %v98
    %v295 = vunpack.c.h.b16 %v98
    %v296 = vunpack.c.l.b16 %v99
    %v297 = vunpack.c.h.b16 %v99
    %v298 = vunpack.c.l.b16 %v100
    %v299 = vunpack.c.h.b16 %v100
    %v300 = vunpack.c.l.b16 %v101
    %v301 = vunpack.c.h.b16 %v101
    %v302 = vunpack.c.l.b16 %v102
    %v303 = vunpack.c.h.b16 %v102
    %v304 = vunpack.c.l.b16 %v103
    %v305 = vunpack.c.h.b16 %v103
    %v306 = vunpack.c.l.b16 %v104
    %v307 = vunpack.c.h.b16 %v104
    %v308 = vunpack.c.l.b16 %v105
    %v309 = vunpack.c.h.b16 %v105
    %v310 = vunpack.c.l.b16 %v106
    %v311 = vunpack.c.h.b16 %v106
    %v312 = vunpack.c.l.b16 %v107
    %v313 = vunpack.c.h.b16 %v107
    %v314 = vunpack.c.l.b16 %v108
    %v315 = vunpack.c.h.b16 %v108
    %v316 = vunpack.c.l.b16 %v109
    %v317 = vunpack.c.h.b16 %v109
    %v318 = vpack.c.b16 %v288, %v286
    %v319 = vpack.c.b16 %v289, %v287
    %v320 = vpack.c.b16 %v292, %v290
    %v321 = vpack.c.b16 %v293, %v291
    %v322 = vpack.c.b16 %v296, %v294
    %v323 = vpack.c.b16 %v297, %v295
    %v324 = vpack.c.b16 %v300, %v298
    %v325 = vpack.c.b16 %v301, %v299
    %v326 = vpack.c.b16 %v304, %v302
    %v327 = vpack.c.b16 %v305, %v303
    %v328 = vpack.c.b16 %v308, %v306
    %v329 = vpack.c.b16 %v309, %v307
    %v330 = vpack.c.b16 %v312, %v310
    %v331 = vpack.c.b16 %v313, %v311
    %v332 = vpack.c.b16 %v316, %v314
    %v333 = vpack.c.b16 %v317, %v315
    %350 = vmatprep.subr.bf16.mxu0 %v319
    %351 = vmatpush1.bf16.msra.mxu0 %v318
    %352 = vmatprep.subr.bf16.mxu0 %v321
    %353 = vmatpush1.bf16.msra.mxu0 %v320
    %354 = vmatprep.subr.bf16.mxu0 %v323
    %355 = vmatpush1.bf16.msra.mxu0 %v322
    %356 = vmatprep.subr.bf16.mxu0 %v325
    %357 = vmatpush1.bf16.msra.mxu0 %v324
    %358 = vmatprep.subr.bf16.mxu0 %v327
    %359 = vmatpush1.bf16.msra.mxu0 %v326
    %360 = vmatprep.subr.bf16.mxu0 %v329
    %361 = vmatpush1.bf16.msra.mxu0 %v328
    %362 = vmatprep.subr.bf16.mxu0 %v331
    %363 = vmatpush1.bf16.msra.mxu0 %v330
    %364 = vmatprep.subr.bf16.mxu0 %v333
    %365 = vmatpush1.bf16.msra.mxu0 %v332
    %366 = vmatprep.subr.bf16.mxu0 0
    %367 = vmatpush1.bf16.msra.mxu0 0
    %368 = vmatprep.subr.bf16.mxu0 0
    %369 = vmatpush1.bf16.msra.mxu0 0
    %370 = vmatprep.subr.bf16.mxu0 0
    %371 = vmatpush1.bf16.msra.mxu0 0
    %372 = vmatprep.subr.bf16.mxu0 0
    %373 = vmatpush1.bf16.msra.mxu0 0
    %374 = vmatprep.subr.bf16.mxu0 0
    %375 = vmatpush1.bf16.msra.mxu0 0
    %376 = vmatprep.subr.bf16.mxu0 0
    %377 = vmatpush1.bf16.msra.mxu0 0
    %378 = vmatprep.subr.bf16.mxu0 0
    %379 = vmatpush1.bf16.msra.mxu0 0
    %380 = vmatprep.subr.bf16.mxu0 0
    %381 = vmatpush1.bf16.msra.mxu0 0
    %382 = vmatprep.mubr.bf16.mxu0 0
    %383 = vmatmul.mubr.bf16.gmra.mrb[0].mxu0 %v257
    %v384 = vpop.f32.mrb[0].mxu0
    %v385 = vadd.f32 %v263, %v384
    %v386 = vpop.f32.mrb[0].mxu0
    %v387 = vadd.f32 %v267, %v386
    %v388 = vpop.f32.mrb[0].mxu0
    %v389 = vpop.f32.mrb[0].mxu0
    %390 = vdwg.mxu0
    %v391 = vxor.u32 %v385, 2147483648
    %v392 = vmul.f32 %v391, 1.442695
    %v393 = vpow.pop %v392
    %v394 = vadd.f32 %v393, 1.0
    %v395 = vrcp.pop %v394
    %v396 = vmul.f32 1.0, %v395
    %v397 = vtanh.pop %v387
    %v398 = vxor.u32 %v387, 2147483648
    %v399 = vmul.f32 %v398, 1.442695
    %v400 = vpow.pop %v399
    %v401 = vadd.f32 %v400, 1.0
    %v402 = vrcp.pop %v401
    %v403 = vmul.f32 1.0, %v402
    %v404 = vmul.f32 %v396, 0.0
    %v405 = vmul.f32 %v396, %v397
    %407 = vrot.lane.b32.xlu0 %v405, 64
    %v408 = vpop.permute.xlu0 %407
    %v410 = vadd.f32 %v404, %v408
    %v411 = vtanh.pop %v410
    %v412 = vmul.f32 %v403, %v411
    %v413 = vpack.c.bf16 %v412, %v412
    %414 = vset.pattern.permute.xlu0 1
    %415 = vperm.xlu0 %414, %v111
    %v416 = vpop.permute.xlu0 %415
    %v418 = vmul.f32 %v416, %v121
    %v419 = vmul.f32 %v416, %v125
    %v420 = vadd.f32 %v418, %v134
    %v421 = vadd.f32 %v419, %v138
    %v422 = vsel %vm183, %v255, 0
    %424 = vmatprep.subr.bf16.mxu0 %v168
    %425 = vmatpush1.bf16.msra.mxu0 %v167
    %426 = vmatprep.subr.bf16.mxu0 %v170
    %427 = vmatpush1.bf16.msra.mxu0 %v169
    %428 = vmatprep.subr.bf16.mxu0 %v172
    %429 = vmatpush1.bf16.msra.mxu0 %v171
    %430 = vmatprep.subr.bf16.mxu0 %v174
    %431 = vmatpush1.bf16.msra.mxu0 %v173
    %432 = vmatprep.subr.bf16.mxu0 0
    %433 = vmatpush1.bf16.msra.mxu0 0
    %434 = vmatprep.subr.bf16.mxu0 0
    %435 = vmatpush1.bf16.msra.mxu0 0
    %436 = vmatprep.subr.bf16.mxu0 0
    %437 = vmatpush1.bf16.msra.mxu0 0
    %438 = vmatprep.subr.bf16.mxu0 0
    %439 = vmatpush1.bf16.msra.mxu0 0
    %440 = vmatprep.subr.bf16.mxu0 0
    %441 = vmatpush1.bf16.msra.mxu0 0
    %442 = vmatprep.subr.bf16.mxu0 0
    %443 = vmatpush1.bf16.msra.mxu0 0
    %444 = vmatprep.subr.bf16.mxu0 0
    %445 = vmatpush1.bf16.msra.mxu0 0
    %446 = vmatprep.subr.bf16.mxu0 0
    %447 = vmatpush1.bf16.msra.mxu0 0
    %448 = vmatprep.subr.bf16.mxu0 0
    %449 = vmatpush1.bf16.msra.mxu0 0
    %450 = vmatprep.subr.bf16.mxu0 0
    %451 = vmatpush1.bf16.msra.mxu0 0
    %452 = vmatprep.subr.bf16.mxu0 0
    %453 = vmatpush1.bf16.msra.mxu0 0
    %454 = vmatprep.subr.bf16.mxu0 0
    %455 = vmatpush1.bf16.msra.mxu0 0
    %456 = vmatprep.mubr.bf16.mxu0 0
    %457 = vmatmul.mubr.bf16.gmra.mrb[0].mxu0 %v422
    %v458 = vpop.f32.mrb[0].mxu0
    %v459 = vadd.f32 0.0, %v458
    %v460 = vpop.f32.mrb[0].mxu0
    %v461 = vadd.f32 0.0, %v460
    %v462 = vpop.f32.mrb[0].mxu0
    %v463 = vpop.f32.mrb[0].mxu0
    %464 = vdwg.mxu0
    %v465 = vadd.f32 %v420, %v459
    %v466 = vadd.f32 %v421, %v461
    %v467 = vxor.u32 %v465, 2147483648
    %v468 = vmul.f32 %v467, 1.442695
    %v469 = vpow.pop %v468
    %v470 = vadd.f32 %v469, 1.0
    %v471 = vrcp.pop %v470
    %v472 = vmul.f32 1.0, %v471
    %v473 = vtanh.pop %v466
    %v474 = vxor.u32 %v466, 2147483648
    %v475 = vmul.f32 %v474, 1.442695
    %v476 = vpow.pop %v475
    %v477 = vadd.f32 %v476, 1.0
    %v478 = vrcp.pop %v477
    %v479 = vmul.f32 1.0, %v478
    %v480 = vmul.f32 %v472, %v249
    %v481 = vmul.f32 %v472, %v473
    %483 = vrot.lane.b32.xlu0 %v481, 64
    %v484 = vpop.permute.xlu0 %483
    %v486 = vadd.f32 %v480, %v484
    %v487 = vtanh.pop %v486
    %v488 = vmul.f32 %v479, %v487
    %v489 = vpack.c.bf16 %v488, %v488
    %491 = vrot.lane.b32.xlu0 %v489, 64
    %v492 = vpop.permute.xlu0 %491
    %v495 = vsel %vm183, %v492, %v413
    %497 = vmatprep.subr.bf16.mxu0 %v319
    %498 = vmatpush1.bf16.msra.mxu0 %v318
    %499 = vmatprep.subr.bf16.mxu0 %v321
    %500 = vmatpush1.bf16.msra.mxu0 %v320
    %501 = vmatprep.subr.bf16.mxu0 %v323
    %502 = vmatpush1.bf16.msra.mxu0 %v322
    %503 = vmatprep.subr.bf16.mxu0 %v325
    %504 = vmatpush1.bf16.msra.mxu0 %v324
    %505 = vmatprep.subr.bf16.mxu0 %v327
    %506 = vmatpush1.bf16.msra.mxu0 %v326
    %507 = vmatprep.subr.bf16.mxu0 %v329
    %508 = vmatpush1.bf16.msra.mxu0 %v328
    %509 = vmatprep.subr.bf16.mxu0 %v331
    %510 = vmatpush1.bf16.msra.mxu0 %v330
    %511 = vmatprep.subr.bf16.mxu0 %v333
    %512 = vmatpush1.bf16.msra.mxu0 %v332
    %513 = vmatprep.subr.bf16.mxu0 0
    %514 = vmatpush1.bf16.msra.mxu0 0
    %515 = vmatprep.subr.bf16.mxu0 0
    %516 = vmatpush1.bf16.msra.mxu0 0
    %517 = vmatprep.subr.bf16.mxu0 0
    %518 = vmatpush1.bf16.msra.mxu0 0
    %519 = vmatprep.subr.bf16.mxu0 0
    %520 = vmatpush1.bf16.msra.mxu0 0
    %521 = vmatprep.subr.bf16.mxu0 0
    %522 = vmatpush1.bf16.msra.mxu0 0
    %523 = vmatprep.subr.bf16.mxu0 0
    %524 = vmatpush1.bf16.msra.mxu0 0
    %525 = vmatprep.subr.bf16.mxu0 0
    %526 = vmatpush1.bf16.msra.mxu0 0
    %527 = vmatprep.subr.bf16.mxu0 0
    %528 = vmatpush1.bf16.msra.mxu0 0
    %529 = vmatprep.mubr.bf16.mxu0 0
    %530 = vmatmul.mubr.bf16.gmra.mrb[0].mxu0 %v495
    %v531 = vpop.f32.mrb[0].mxu0
    %v532 = vadd.f32 %v263, %v531
    %v533 = vpop.f32.mrb[0].mxu0
    %v534 = vadd.f32 %v267, %v533
    %v535 = vpop.f32.mrb[0].mxu0
    %v536 = vpop.f32.mrb[0].mxu0
    %537 = vdwg.mxu0
    %v538 = vxor.u32 %v532, 2147483648
    %v539 = vmul.f32 %v538, 1.442695
    %v540 = vpow.pop %v539
    %v541 = vadd.f32 %v540, 1.0
    %v542 = vrcp.pop %v541
    %v543 = vmul.f32 1.0, %v542
    %v544 = vtanh.pop %v534
    %v545 = vxor.u32 %v534, 2147483648
    %v546 = vmul.f32 %v545, 1.442695
    %v547 = vpow.pop %v546
    %v548 = vadd.f32 %v547, 1.0
    %v549 = vrcp.pop %v548
    %v550 = vmul.f32 1.0, %v549
    %v551 = vmul.f32 %v543, %v410
    %v552 = vmul.f32 %v543, %v544
    %554 = vrot.lane.b32.xlu0 %v552, 64
    %v555 = vpop.permute.xlu0 %554
    %v557 = vadd.f32 %v551, %v555
    %v558 = vtanh.pop %v557
    %v559 = vmul.f32 %v550, %v558
    %v560 = vpack.c.bf16 %v559, %v559
    %561 = vset.pattern.permute.xlu0 2
    %562 = vperm.xlu0 %561, %v111
    %v563 = vpop.permute.xlu0 %562
    %v565 = vmul.f32 %v563, %v121
    %v566 = vmul.f32 %v563, %v125
    %v567 = vadd.f32 %v565, %v134
    %v568 = vadd.f32 %v566, %v138
    %v569 = vsel %vm183, %v492, 0
    %571 = vmatprep.subr.bf16.mxu0 %v168
    %572 = vmatpush1.bf16.msra.mxu0 %v167
    %573 = vmatprep.subr.bf16.mxu0 %v170
    %574 = vmatpush1.bf16.msra.mxu0 %v169
    %575 = vmatprep.subr.bf16.mxu0 %v172
    %576 = vmatpush1.bf16.msra.mxu0 %v171
    %577 = vmatprep.subr.bf16.mxu0 %v174
    %578 = vmatpush1.bf16.msra.mxu0 %v173
    %579 = vmatprep.subr.bf16.mxu0 0
    %580 = vmatpush1.bf16.msra.mxu0 0
    %581 = vmatprep.subr.bf16.mxu0 0
    %582 = vmatpush1.bf16.msra.mxu0 0
    %583 = vmatprep.subr.bf16.mxu0 0
    %584 = vmatpush1.bf16.msra.mxu0 0
    %585 = vmatprep.subr.bf16.mxu0 0
    %586 = vmatpush1.bf16.msra.mxu0 0
    %587 = vmatprep.subr.bf16.mxu0 0
    %588 = vmatpush1.bf16.msra.mxu0 0
    %589 = vmatprep.subr.bf16.mxu0 0
    %590 = vmatpush1.bf16.msra.mxu0 0
    %591 = vmatprep.subr.bf16.mxu0 0
    %592 = vmatpush1.bf16.msra.mxu0 0
    %593 = vmatprep.subr.bf16.mxu0 0
    %594 = vmatpush1.bf16.msra.mxu0 0
    %595 = vmatprep.subr.bf16.mxu0 0
    %596 = vmatpush1.bf16.msra.mxu0 0
    %597 = vmatprep.subr.bf16.mxu0 0
    %598 = vmatpush1.bf16.msra.mxu0 0
    %599 = vmatprep.subr.bf16.mxu0 0
    %600 = vmatpush1.bf16.msra.mxu0 0
    %601 = vmatprep.subr.bf16.mxu0 0
    %602 = vmatpush1.bf16.msra.mxu0 0
    %603 = vmatprep.mubr.bf16.mxu0 0
    %604 = vmatmul.mubr.bf16.gmra.mrb[0].mxu0 %v569
    %v605 = vpop.f32.mrb[0].mxu0
    %v606 = vadd.f32 0.0, %v605
    %v607 = vpop.f32.mrb[0].mxu0
    %v608 = vadd.f32 0.0, %v607
    %v609 = vpop.f32.mrb[0].mxu0
    %v610 = vpop.f32.mrb[0].mxu0
    %611 = vdwg.mxu0
    %v612 = vadd.f32 %v567, %v606
    %v613 = vadd.f32 %v568, %v608
    %v614 = vxor.u32 %v612, 2147483648
    %v615 = vmul.f32 %v614, 1.442695
    %v616 = vpow.pop %v615
    %v617 = vadd.f32 %v616, 1.0
    %v618 = vrcp.pop %v617
    %v619 = vmul.f32 1.0, %v618
    %v620 = vtanh.pop %v613
    %v621 = vxor.u32 %v613, 2147483648
    %v622 = vmul.f32 %v621, 1.442695
    %v623 = vpow.pop %v622
    %v624 = vadd.f32 %v623, 1.0
    %v625 = vrcp.pop %v624
    %v626 = vmul.f32 1.0, %v625
    %v627 = vmul.f32 %v619, %v486
    %v628 = vmul.f32 %v619, %v620
    %630 = vrot.lane.b32.xlu0 %v628, 64
    %v631 = vpop.permute.xlu0 %630
    %v633 = vadd.f32 %v627, %v631
    %v634 = vtanh.pop %v633
    %v635 = vmul.f32 %v626, %v634
    %v636 = vpack.c.bf16 %v635, %v635
    %638 = vrot.lane.b32.xlu0 %v636, 64
    %v639 = vpop.permute.xlu0 %638
    %v642 = vsel %vm183, %v639, %v560
    %644 = vmatprep.subr.bf16.mxu0 %v319
    %645 = vmatpush1.bf16.msra.mxu0 %v318
    %646 = vmatprep.subr.bf16.mxu0 %v321
    %647 = vmatpush1.bf16.msra.mxu0 %v320
    %648 = vmatprep.subr.bf16.mxu0 %v323
    %649 = vmatpush1.bf16.msra.mxu0 %v322
    %650 = vmatprep.subr.bf16.mxu0 %v325
    %651 = vmatpush1.bf16.msra.mxu0 %v324
    %652 = vmatprep.subr.bf16.mxu0 %v327
    %653 = vmatpush1.bf16.msra.mxu0 %v326
    %654 = vmatprep.subr.bf16.mxu0 %v329
    %655 = vmatpush1.bf16.msra.mxu0 %v328
    %656 = vmatprep.subr.bf16.mxu0 %v331
    %657 = vmatpush1.bf16.msra.mxu0 %v330
    %658 = vmatprep.subr.bf16.mxu0 %v333
    %659 = vmatpush1.bf16.msra.mxu0 %v332
    %660 = vmatprep.subr.bf16.mxu0 0
    %661 = vmatpush1.bf16.msra.mxu0 0
    %662 = vmatprep.subr.bf16.mxu0 0
    %663 = vmatpush1.bf16.msra.mxu0 0
    %664 = vmatprep.subr.bf16.mxu0 0
    %665 = vmatpush1.bf16.msra.mxu0 0
    %666 = vmatprep.subr.bf16.mxu0 0
    %667 = vmatpush1.bf16.msra.mxu0 0
    %668 = vmatprep.subr.bf16.mxu0 0
    %669 = vmatpush1.bf16.msra.mxu0 0
    %670 = vmatprep.subr.bf16.mxu0 0
    %671 = vmatpush1.bf16.msra.mxu0 0
    %672 = vmatprep.subr.bf16.mxu0 0
    %673 = vmatpush1.bf16.msra.mxu0 0
    %674 = vmatprep.subr.bf16.mxu0 0
    %675 = vmatpush1.bf16.msra.mxu0 0
    %676 = vmatprep.mubr.bf16.mxu0 0
    %677 = vmatmul.mubr.bf16.gmra.mrb[0].mxu0 %v642
    %v678 = vpop.f32.mrb[0].mxu0
    %v679 = vadd.f32 %v263, %v678
    %v680 = vpop.f32.mrb[0].mxu0
    %v681 = vadd.f32 %v267, %v680
    %v682 = vpop.f32.mrb[0].mxu0
    %v683 = vpop.f32.mrb[0].mxu0
    %684 = vdwg.mxu0
    %v685 = vxor.u32 %v679, 2147483648
    %v686 = vmul.f32 %v685, 1.442695
    %v687 = vpow.pop %v686
    %v688 = vadd.f32 %v687, 1.0
    %v689 = vrcp.pop %v688
    %v690 = vmul.f32 1.0, %v689
    %v691 = vtanh.pop %v681
    %v692 = vxor.u32 %v681, 2147483648
    %v693 = vmul.f32 %v692, 1.442695
    %v694 = vpow.pop %v693
    %v695 = vadd.f32 %v694, 1.0
    %v696 = vrcp.pop %v695
    %v697 = vmul.f32 1.0, %v696
    %v698 = vmul.f32 %v690, %v557
    %v699 = vmul.f32 %v690, %v691
    %701 = vrot.lane.b32.xlu0 %v699, 64
    %v702 = vpop.permute.xlu0 %701
    %v704 = vadd.f32 %v698, %v702
    %v705 = vtanh.pop %v704
    %v706 = vmul.f32 %v697, %v705
    %v707 = vpack.c.bf16 %v706, %v706
    %708 = vset.pattern.permute.xlu0 3
    %709 = vperm.xlu0 %708, %v111
    %v710 = vpop.permute.xlu0 %709
    %v712 = vmul.f32 %v710, %v121
    %v713 = vmul.f32 %v710, %v125
    %v714 = vadd.f32 %v712, %v134
    %v715 = vadd.f32 %v713, %v138
    %v716 = vsel %vm183, %v639, 0
    %718 = vmatprep.subr.bf16.mxu0 %v168
    %719 = vmatpush1.bf16.msra.mxu0 %v167
    %720 = vmatprep.subr.bf16.mxu0 %v170
    %721 = vmatpush1.bf16.msra.mxu0 %v169
    %722 = vmatprep.subr.bf16.mxu0 %v172
    %723 = vmatpush1.bf16.msra.mxu0 %v171
    %724 = vmatprep.subr.bf16.mxu0 %v174
    %725 = vmatpush1.bf16.msra.mxu0 %v173
    %726 = vmatprep.subr.bf16.mxu0 0
    %727 = vmatpush1.bf16.msra.mxu0 0
    %728 = vmatprep.subr.bf16.mxu0 0
    %729 = vmatpush1.bf16.msra.mxu0 0
    %730 = vmatprep.subr.bf16.mxu0 0
    %731 = vmatpush1.bf16.msra.mxu0 0
    %732 = vmatprep.subr.bf16.mxu0 0
    %733 = vmatpush1.bf16.msra.mxu0 0
    %734 = vmatprep.subr.bf16.mxu0 0
    %735 = vmatpush1.bf16.msra.mxu0 0
    %736 = vmatprep.subr.bf16.mxu0 0
    %737 = vmatpush1.bf16.msra.mxu0 0
    %738 = vmatprep.subr.bf16.mxu0 0
    %739 = vmatpush1.bf16.msra.mxu0 0
    %740 = vmatprep.subr.bf16.mxu0 0
    %741 = vmatpush1.bf16.msra.mxu0 0
    %742 = vmatprep.subr.bf16.mxu0 0
    %743 = vmatpush1.bf16.msra.mxu0 0
    %744 = vmatprep.subr.bf16.mxu0 0
    %745 = vmatpush1.bf16.msra.mxu0 0
    %746 = vmatprep.subr.bf16.mxu0 0
    %747 = vmatpush1.bf16.msra.mxu0 0
    %748 = vmatprep.subr.bf16.mxu0 0
    %749 = vmatpush1.bf16.msra.mxu0 0
    %750 = vmatprep.mubr.bf16.mxu0 0
    %751 = vmatmul.mubr.bf16.gmra.mrb[0].mxu0 %v716
    %v752 = vpop.f32.mrb[0].mxu0
    %v753 = vadd.f32 0.0, %v752
    %v754 = vpop.f32.mrb[0].mxu0
    %v755 = vadd.f32 0.0, %v754
    %v756 = vpop.f32.mrb[0].mxu0
    %v757 = vpop.f32.mrb[0].mxu0
    %758 = vdwg.mxu0
    %v759 = vadd.f32 %v714, %v753
    %v760 = vadd.f32 %v715, %v755
    %v761 = vxor.u32 %v759, 2147483648
    %v762 = vmul.f32 %v761, 1.442695
    %v763 = vpow.pop %v762
    %v764 = vadd.f32 %v763, 1.0
    %v765 = vrcp.pop %v764
    %v766 = vmul.f32 1.0, %v765
    %v767 = vtanh.pop %v760
    %v768 = vxor.u32 %v760, 2147483648
    %v769 = vmul.f32 %v768, 1.442695
    %v770 = vpow.pop %v769
    %v771 = vadd.f32 %v770, 1.0
    %v772 = vrcp.pop %v771
    %v773 = vmul.f32 1.0, %v772
    %v774 = vmul.f32 %v766, %v633
    %v775 = vmul.f32 %v766, %v767
    %777 = vrot.lane.b32.xlu0 %v775, 64
    %v778 = vpop.permute.xlu0 %777
    %v780 = vadd.f32 %v774, %v778
    %v781 = vtanh.pop %v780
    %v782 = vmul.f32 %v773, %v781
    %v783 = vpack.c.bf16 %v782, %v782
    %785 = vrot.lane.b32.xlu0 %v783, 64
    %v786 = vpop.permute.xlu0 %785
    %v789 = vsel %vm183, %v786, %v707
    %791 = vmatprep.subr.bf16.mxu0 %v319
    %792 = vmatpush1.bf16.msra.mxu0 %v318
    %793 = vmatprep.subr.bf16.mxu0 %v321
    %794 = vmatpush1.bf16.msra.mxu0 %v320
    %795 = vmatprep.subr.bf16.mxu0 %v323
    %796 = vmatpush1.bf16.msra.mxu0 %v322
    %797 = vmatprep.subr.bf16.mxu0 %v325
    %798 = vmatpush1.bf16.msra.mxu0 %v324
    %799 = vmatprep.subr.bf16.mxu0 %v327
    %800 = vmatpush1.bf16.msra.mxu0 %v326
    %801 = vmatprep.subr.bf16.mxu0 %v329
    %802 = vmatpush1.bf16.msra.mxu0 %v328
    %803 = vmatprep.subr.bf16.mxu0 %v331
    %804 = vmatpush1.bf16.msra.mxu0 %v330
    %805 = vmatprep.subr.bf16.mxu0 %v333
    %806 = vmatpush1.bf16.msra.mxu0 %v332
    %807 = vmatprep.subr.bf16.mxu0 0
    %808 = vmatpush1.bf16.msra.mxu0 0
    %809 = vmatprep.subr.bf16.mxu0 0
    %810 = vmatpush1.bf16.msra.mxu0 0
    %811 = vmatprep.subr.bf16.mxu0 0
    %812 = vmatpush1.bf16.msra.mxu0 0
    %813 = vmatprep.subr.bf16.mxu0 0
    %814 = vmatpush1.bf16.msra.mxu0 0
    %815 = vmatprep.subr.bf16.mxu0 0
    %816 = vmatpush1.bf16.msra.mxu0 0
    %817 = vmatprep.subr.bf16.mxu0 0
    %818 = vmatpush1.bf16.msra.mxu0 0
    %819 = vmatprep.subr.bf16.mxu0 0
    %820 = vmatpush1.bf16.msra.mxu0 0
    %821 = vmatprep.subr.bf16.mxu0 0
    %822 = vmatpush1.bf16.msra.mxu0 0
    %823 = vmatprep.mubr.bf16.mxu0 0
    %824 = vmatmul.mubr.bf16.gmra.mrb[0].mxu0 %v789
    %v825 = vpop.f32.mrb[0].mxu0
    %v826 = vadd.f32 %v263, %v825
    %v827 = vpop.f32.mrb[0].mxu0
    %v828 = vadd.f32 %v267, %v827
    %v829 = vpop.f32.mrb[0].mxu0
    %v830 = vpop.f32.mrb[0].mxu0
    %831 = vdwg.mxu0
    %v832 = vxor.u32 %v826, 2147483648
    %v833 = vmul.f32 %v832, 1.442695
    %v834 = vpow.pop %v833
    %v835 = vadd.f32 %v834, 1.0
    %v836 = vrcp.pop %v835
    %v837 = vmul.f32 1.0, %v836
    %v838 = vtanh.pop %v828
    %v839 = vxor.u32 %v828, 2147483648
    %v840 = vmul.f32 %v839, 1.442695
    %v841 = vpow.pop %v840
    %v842 = vadd.f32 %v841, 1.0
    %v843 = vrcp.pop %v842
    %v844 = vmul.f32 1.0, %v843
    %v845 = vmul.f32 %v837, %v704
    %v846 = vmul.f32 %v837, %v838
    %848 = vrot.lane.b32.xlu0 %v846, 64
    %v849 = vpop.permute.xlu0 %848
    %v851 = vadd.f32 %v845, %v849
    %v852 = vtanh.pop %v851
    %v853 = vmul.f32 %v844, %v852
    %v854 = vpack.c.bf16 %v853, %v853
    %855 = vset.pattern.permute.xlu0 4
    %856 = vperm.xlu0 %855, %v111
    %v857 = vpop.permute.xlu0 %856
    %v859 = vmul.f32 %v857, %v121
    %v860 = vmul.f32 %v857, %v125
    %v861 = vadd.f32 %v859, %v134
    %v862 = vadd.f32 %v860, %v138
    %v863 = vsel %vm183, %v786, 0
    %865 = vmatprep.subr.bf16.mxu0 %v168
    %866 = vmatpush1.bf16.msra.mxu0 %v167
    %867 = vmatprep.subr.bf16.mxu0 %v170
    %868 = vmatpush1.bf16.msra.mxu0 %v169
    %869 = vmatprep.subr.bf16.mxu0 %v172
    %870 = vmatpush1.bf16.msra.mxu0 %v171
    %871 = vmatprep.subr.bf16.mxu0 %v174
    %872 = vmatpush1.bf16.msra.mxu0 %v173
    %873 = vmatprep.subr.bf16.mxu0 0
    %874 = vmatpush1.bf16.msra.mxu0 0
    %875 = vmatprep.subr.bf16.mxu0 0
    %876 = vmatpush1.bf16.msra.mxu0 0
    %877 = vmatprep.subr.bf16.mxu0 0
    %878 = vmatpush1.bf16.msra.mxu0 0
    %879 = vmatprep.subr.bf16.mxu0 0
    %880 = vmatpush1.bf16.msra.mxu0 0
    %881 = vmatprep.subr.bf16.mxu0 0
    %882 = vmatpush1.bf16.msra.mxu0 0
    %883 = vmatprep.subr.bf16.mxu0 0
    %884 = vmatpush1.bf16.msra.mxu0 0
    %885 = vmatprep.subr.bf16.mxu0 0
    %886 = vmatpush1.bf16.msra.mxu0 0
    %887 = vmatprep.subr.bf16.mxu0 0
    %888 = vmatpush1.bf16.msra.mxu0 0
    %889 = vmatprep.subr.bf16.mxu0 0
    %890 = vmatpush1.bf16.msra.mxu0 0
    %891 = vmatprep.subr.bf16.mxu0 0
    %892 = vmatpush1.bf16.msra.mxu0 0
    %893 = vmatprep.subr.bf16.mxu0 0
    %894 = vmatpush1.bf16.msra.mxu0 0
    %895 = vmatprep.subr.bf16.mxu0 0
    %896 = vmatpush1.bf16.msra.mxu0 0
    %897 = vmatprep.mubr.bf16.mxu0 0
    %898 = vmatmul.mubr.bf16.gmra.mrb[0].mxu0 %v863
    %v899 = vpop.f32.mrb[0].mxu0
    %v900 = vadd.f32 0.0, %v899
    %v901 = vpop.f32.mrb[0].mxu0
    %v902 = vadd.f32 0.0, %v901
    %v903 = vpop.f32.mrb[0].mxu0
    %v904 = vpop.f32.mrb[0].mxu0
    %905 = vdwg.mxu0
    %v906 = vadd.f32 %v861, %v900
    %v907 = vadd.f32 %v862, %v902
    %v908 = vxor.u32 %v906, 2147483648
    %v909 = vmul.f32 %v908, 1.442695
    %v910 = vpow.pop %v909
    %v911 = vadd.f32 %v910, 1.0
    %v912 = vrcp.pop %v911
    %v913 = vmul.f32 1.0, %v912
    %v914 = vtanh.pop %v907
    %v915 = vxor.u32 %v907, 2147483648
    %v916 = vmul.f32 %v915, 1.442695
    %v917 = vpow.pop %v916
    %v918 = vadd.f32 %v917, 1.0
    %v919 = vrcp.pop %v918
    %v920 = vmul.f32 1.0, %v919
    %v921 = vmul.f32 %v913, %v780
    %v922 = vmul.f32 %v913, %v914
    %924 = vrot.lane.b32.xlu0 %v922, 64
    %v925 = vpop.permute.xlu0 %924
    %v927 = vadd.f32 %v921, %v925
    %v928 = vtanh.pop %v927
    %v929 = vmul.f32 %v920, %v928
    %v930 = vpack.c.bf16 %v929, %v929
    %932 = vrot.lane.b32.xlu0 %v930, 64
    %v933 = vpop.permute.xlu0 %932
    %v936 = vsel %vm183, %v933, %v854
    %938 = vmatprep.subr.bf16.mxu0 %v319
    %939 = vmatpush1.bf16.msra.mxu0 %v318
    %940 = vmatprep.subr.bf16.mxu0 %v321
    %941 = vmatpush1.bf16.msra.mxu0 %v320
    %942 = vmatprep.subr.bf16.mxu0 %v323
    %943 = vmatpush1.bf16.msra.mxu0 %v322
    %944 = vmatprep.subr.bf16.mxu0 %v325
    %945 = vmatpush1.bf16.msra.mxu0 %v324
    %946 = vmatprep.subr.bf16.mxu0 %v327
    %947 = vmatpush1.bf16.msra.mxu0 %v326
    %948 = vmatprep.subr.bf16.mxu0 %v329
    %949 = vmatpush1.bf16.msra.mxu0 %v328
    %950 = vmatprep.subr.bf16.mxu0 %v331
    %951 = vmatpush1.bf16.msra.mxu0 %v330
    %952 = vmatprep.subr.bf16.mxu0 %v333
    %953 = vmatpush1.bf16.msra.mxu0 %v332
    %954 = vmatprep.subr.bf16.mxu0 0
    %955 = vmatpush1.bf16.msra.mxu0 0
    %956 = vmatprep.subr.bf16.mxu0 0
    %957 = vmatpush1.bf16.msra.mxu0 0
    %958 = vmatprep.subr.bf16.mxu0 0
    %959 = vmatpush1.bf16.msra.mxu0 0
    %960 = vmatprep.subr.bf16.mxu0 0
    %961 = vmatpush1.bf16.msra.mxu0 0
    %962 = vmatprep.subr.bf16.mxu0 0
    %963 = vmatpush1.bf16.msra.mxu0 0
    %964 = vmatprep.subr.bf16.mxu0 0
    %965 = vmatpush1.bf16.msra.mxu0 0
    %966 = vmatprep.subr.bf16.mxu0 0
    %967 = vmatpush1.bf16.msra.mxu0 0
    %968 = vmatprep.subr.bf16.mxu0 0
    %969 = vmatpush1.bf16.msra.mxu0 0
    %970 = vmatprep.mubr.bf16.mxu0 0
    %971 = vmatmul.mubr.bf16.gmra.mrb[0].mxu0 %v936
    %v972 = vpop.f32.mrb[0].mxu0
    %v973 = vadd.f32 %v263, %v972
    %v974 = vpop.f32.mrb[0].mxu0
    %v975 = vadd.f32 %v267, %v974
    %v976 = vpop.f32.mrb[0].mxu0
    %v977 = vpop.f32.mrb[0].mxu0
    %978 = vdwg.mxu0
    %v979 = vxor.u32 %v973, 2147483648
    %v980 = vmul.f32 %v979, 1.442695
    %v981 = vpow.pop %v980
    %v982 = vadd.f32 %v981, 1.0
    %v983 = vrcp.pop %v982
    %v984 = vmul.f32 1.0, %v983
    %v985 = vtanh.pop %v975
    %v986 = vxor.u32 %v975, 2147483648
    %v987 = vmul.f32 %v986, 1.442695
    %v988 = vpow.pop %v987
    %v989 = vadd.f32 %v988, 1.0
    %v990 = vrcp.pop %v989
    %v991 = vmul.f32 1.0, %v990
    %v992 = vmul.f32 %v984, %v851
    %v993 = vmul.f32 %v984, %v985
    %995 = vrot.lane.b32.xlu0 %v993, 64
    %v996 = vpop.permute.xlu0 %995
    %v998 = vadd.f32 %v992, %v996
    %v999 = vtanh.pop %v998
    %v1000 = vmul.f32 %v991, %v999
    %v1001 = vpack.c.bf16 %v1000, %v1000
    %1002 = vset.pattern.permute.xlu0 5
    %1003 = vperm.xlu0 %1002, %v111
    %v1004 = vpop.permute.xlu0 %1003
    %v1006 = vmul.f32 %v1004, %v121
    %v1007 = vmul.f32 %v1004, %v125
    %v1008 = vadd.f32 %v1006, %v134
    %v1009 = vadd.f32 %v1007, %v138
    %v1010 = vsel %vm183, %v933, 0
    %1012 = vmatprep.subr.bf16.mxu0 %v168
    %1013 = vmatpush1.bf16.msra.mxu0 %v167
    %1014 = vmatprep.subr.bf16.mxu0 %v170
    %1015 = vmatpush1.bf16.msra.mxu0 %v169
    %1016 = vmatprep.subr.bf16.mxu0 %v172
    %1017 = vmatpush1.bf16.msra.mxu0 %v171
    %1018 = vmatprep.subr.bf16.mxu0 %v174
    %1019 = vmatpush1.bf16.msra.mxu0 %v173
    %1020 = vmatprep.subr.bf16.mxu0 0
    %1021 = vmatpush1.bf16.msra.mxu0 0
    %1022 = vmatprep.subr.bf16.mxu0 0
    %1023 = vmatpush1.bf16.msra.mxu0 0
    %1024 = vmatprep.subr.bf16.mxu0 0
    %1025 = vmatpush1.bf16.msra.mxu0 0
    %1026 = vmatprep.subr.bf16.mxu0 0
    %1027 = vmatpush1.bf16.msra.mxu0 0
    %1028 = vmatprep.subr.bf16.mxu0 0
    %1029 = vmatpush1.bf16.msra.mxu0 0
    %1030 = vmatprep.subr.bf16.mxu0 0
    %1031 = vmatpush1.bf16.msra.mxu0 0
    %1032 = vmatprep.subr.bf16.mxu0 0
    %1033 = vmatpush1.bf16.msra.mxu0 0
    %1034 = vmatprep.subr.bf16.mxu0 0
    %1035 = vmatpush1.bf16.msra.mxu0 0
    %1036 = vmatprep.subr.bf16.mxu0 0
    %1037 = vmatpush1.bf16.msra.mxu0 0
    %1038 = vmatprep.subr.bf16.mxu0 0
    %1039 = vmatpush1.bf16.msra.mxu0 0
    %1040 = vmatprep.subr.bf16.mxu0 0
    %1041 = vmatpush1.bf16.msra.mxu0 0
    %1042 = vmatprep.subr.bf16.mxu0 0
    %1043 = vmatpush1.bf16.msra.mxu0 0
    %1044 = vmatprep.mubr.bf16.mxu0 0
    %1045 = vmatmul.mubr.bf16.gmra.mrb[0].mxu0 %v1010
    %v1046 = vpop.f32.mrb[0].mxu0
    %v1047 = vadd.f32 0.0, %v1046
    %v1048 = vpop.f32.mrb[0].mxu0
    %v1049 = vadd.f32 0.0, %v1048
    %v1050 = vpop.f32.mrb[0].mxu0
    %v1051 = vpop.f32.mrb[0].mxu0
    %1052 = vdwg.mxu0
    %v1053 = vadd.f32 %v1008, %v1047
    %v1054 = vadd.f32 %v1009, %v1049
    %v1055 = vxor.u32 %v1053, 2147483648
    %v1056 = vmul.f32 %v1055, 1.442695
    %v1057 = vpow.pop %v1056
    %v1058 = vadd.f32 %v1057, 1.0
    %v1059 = vrcp.pop %v1058
    %v1060 = vmul.f32 1.0, %v1059
    %v1061 = vtanh.pop %v1054
    %v1062 = vxor.u32 %v1054, 2147483648
    %v1063 = vmul.f32 %v1062, 1.442695
    %v1064 = vpow.pop %v1063
    %v1065 = vadd.f32 %v1064, 1.0
    %v1066 = vrcp.pop %v1065
    %v1067 = vmul.f32 1.0, %v1066
    %v1068 = vmul.f32 %v1060, %v927
    %v1069 = vmul.f32 %v1060, %v1061
    %1071 = vrot.lane.b32.xlu0 %v1069, 64
    %v1072 = vpop.permute.xlu0 %1071
    %v1074 = vadd.f32 %v1068, %v1072
    %v1075 = vtanh.pop %v1074
    %v1076 = vmul.f32 %v1067, %v1075
    %v1077 = vpack.c.bf16 %v1076, %v1076
    %1079 = vrot.lane.b32.xlu0 %v1077, 64
    %v1080 = vpop.permute.xlu0 %1079
    %v1083 = vsel %vm183, %v1080, %v1001
    %1085 = vmatprep.subr.bf16.mxu0 %v319
    %1086 = vmatpush1.bf16.msra.mxu0 %v318
    %1087 = vmatprep.subr.bf16.mxu0 %v321
    %1088 = vmatpush1.bf16.msra.mxu0 %v320
    %1089 = vmatprep.subr.bf16.mxu0 %v323
    %1090 = vmatpush1.bf16.msra.mxu0 %v322
    %1091 = vmatprep.subr.bf16.mxu0 %v325
    %1092 = vmatpush1.bf16.msra.mxu0 %v324
    %1093 = vmatprep.subr.bf16.mxu0 %v327
    %1094 = vmatpush1.bf16.msra.mxu0 %v326
    %1095 = vmatprep.subr.bf16.mxu0 %v329
    %1096 = vmatpush1.bf16.msra.mxu0 %v328
    %1097 = vmatprep.subr.bf16.mxu0 %v331
    %1098 = vmatpush1.bf16.msra.mxu0 %v330
    %1099 = vmatprep.subr.bf16.mxu0 %v333
    %1100 = vmatpush1.bf16.msra.mxu0 %v332
    %1101 = vmatprep.subr.bf16.mxu0 0
    %1102 = vmatpush1.bf16.msra.mxu0 0
    %1103 = vmatprep.subr.bf16.mxu0 0
    %1104 = vmatpush1.bf16.msra.mxu0 0
    %1105 = vmatprep.subr.bf16.mxu0 0
    %1106 = vmatpush1.bf16.msra.mxu0 0
    %1107 = vmatprep.subr.bf16.mxu0 0
    %1108 = vmatpush1.bf16.msra.mxu0 0
    %1109 = vmatprep.subr.bf16.mxu0 0
    %1110 = vmatpush1.bf16.msra.mxu0 0
    %1111 = vmatprep.subr.bf16.mxu0 0
    %1112 = vmatpush1.bf16.msra.mxu0 0
    %1113 = vmatprep.subr.bf16.mxu0 0
    %1114 = vmatpush1.bf16.msra.mxu0 0
    %1115 = vmatprep.subr.bf16.mxu0 0
    %1116 = vmatpush1.bf16.msra.mxu0 0
    %1117 = vmatprep.mubr.bf16.mxu0 0
    %1118 = vmatmul.mubr.bf16.gmra.mrb[0].mxu0 %v1083
    %v1119 = vpop.f32.mrb[0].mxu0
    %v1120 = vadd.f32 %v263, %v1119
    %v1121 = vpop.f32.mrb[0].mxu0
    %v1122 = vadd.f32 %v267, %v1121
    %v1123 = vpop.f32.mrb[0].mxu0
    %v1124 = vpop.f32.mrb[0].mxu0
    %1125 = vdwg.mxu0
    %v1126 = vxor.u32 %v1120, 2147483648
    %v1127 = vmul.f32 %v1126, 1.442695
    %v1128 = vpow.pop %v1127
    %v1129 = vadd.f32 %v1128, 1.0
    %v1130 = vrcp.pop %v1129
    %v1131 = vmul.f32 1.0, %v1130
    %v1132 = vtanh.pop %v1122
    %v1133 = vxor.u32 %v1122, 2147483648
    %v1134 = vmul.f32 %v1133, 1.442695
    %v1135 = vpow.pop %v1134
    %v1136 = vadd.f32 %v1135, 1.0
    %v1137 = vrcp.pop %v1136
    %v1138 = vmul.f32 1.0, %v1137
    %v1139 = vmul.f32 %v1131, %v998
    %v1140 = vmul.f32 %v1131, %v1132
    %1142 = vrot.lane.b32.xlu0 %v1140, 64
    %v1143 = vpop.permute.xlu0 %1142
    %v1145 = vadd.f32 %v1139, %v1143
    %v1146 = vtanh.pop %v1145
    %v1147 = vmul.f32 %v1138, %v1146
    %v1148 = vpack.c.bf16 %v1147, %v1147
    %1149 = vset.pattern.permute.xlu0 6
    %1150 = vperm.xlu0 %1149, %v111
    %v1151 = vpop.permute.xlu0 %1150
    %v1153 = vmul.f32 %v1151, %v121
    %v1154 = vmul.f32 %v1151, %v125
    %v1155 = vadd.f32 %v1153, %v134
    %v1156 = vadd.f32 %v1154, %v138
    %v1157 = vsel %vm183, %v1080, 0
    %1159 = vmatprep.subr.bf16.mxu0 %v168
    %1160 = vmatpush1.bf16.msra.mxu0 %v167
    %1161 = vmatprep.subr.bf16.mxu0 %v170
    %1162 = vmatpush1.bf16.msra.mxu0 %v169
    %1163 = vmatprep.subr.bf16.mxu0 %v172
    %1164 = vmatpush1.bf16.msra.mxu0 %v171
    %1165 = vmatprep.subr.bf16.mxu0 %v174
    %1166 = vmatpush1.bf16.msra.mxu0 %v173
    %1167 = vmatprep.subr.bf16.mxu0 0
    %1168 = vmatpush1.bf16.msra.mxu0 0
    %1169 = vmatprep.subr.bf16.mxu0 0
    %1170 = vmatpush1.bf16.msra.mxu0 0
    %1171 = vmatprep.subr.bf16.mxu0 0
    %1172 = vmatpush1.bf16.msra.mxu0 0
    %1173 = vmatprep.subr.bf16.mxu0 0
    %1174 = vmatpush1.bf16.msra.mxu0 0
    %1175 = vmatprep.subr.bf16.mxu0 0
    %1176 = vmatpush1.bf16.msra.mxu0 0
    %1177 = vmatprep.subr.bf16.mxu0 0
    %1178 = vmatpush1.bf16.msra.mxu0 0
    %1179 = vmatprep.subr.bf16.mxu0 0
    %1180 = vmatpush1.bf16.msra.mxu0 0
    %1181 = vmatprep.subr.bf16.mxu0 0
    %1182 = vmatpush1.bf16.msra.mxu0 0
    %1183 = vmatprep.subr.bf16.mxu0 0
    %1184 = vmatpush1.bf16.msra.mxu0 0
    %1185 = vmatprep.subr.bf16.mxu0 0
    %1186 = vmatpush1.bf16.msra.mxu0 0
    %1187 = vmatprep.subr.bf16.mxu0 0
    %1188 = vmatpush1.bf16.msra.mxu0 0
    %1189 = vmatprep.subr.bf16.mxu0 0
    %1190 = vmatpush1.bf16.msra.mxu0 0
    %1191 = vmatprep.mubr.bf16.mxu0 0
    %1192 = vmatmul.mubr.bf16.gmra.mrb[0].mxu0 %v1157
    %v1193 = vpop.f32.mrb[0].mxu0
    %v1194 = vadd.f32 0.0, %v1193
    %v1195 = vpop.f32.mrb[0].mxu0
    %v1196 = vadd.f32 0.0, %v1195
    %v1197 = vpop.f32.mrb[0].mxu0
    %v1198 = vpop.f32.mrb[0].mxu0
    %1199 = vdwg.mxu0
    %v1200 = vadd.f32 %v1155, %v1194
    %v1201 = vadd.f32 %v1156, %v1196
    %v1202 = vxor.u32 %v1200, 2147483648
    %v1203 = vmul.f32 %v1202, 1.442695
    %v1204 = vpow.pop %v1203
    %v1205 = vadd.f32 %v1204, 1.0
    %v1206 = vrcp.pop %v1205
    %v1207 = vmul.f32 1.0, %v1206
    %v1208 = vtanh.pop %v1201
    %v1209 = vxor.u32 %v1201, 2147483648
    %v1210 = vmul.f32 %v1209, 1.442695
    %v1211 = vpow.pop %v1210
    %v1212 = vadd.f32 %v1211, 1.0
    %v1213 = vrcp.pop %v1212
    %v1214 = vmul.f32 1.0, %v1213
    %v1215 = vmul.f32 %v1207, %v1074
    %v1216 = vmul.f32 %v1207, %v1208
    %1218 = vrot.lane.b32.xlu0 %v1216, 64
    %v1219 = vpop.permute.xlu0 %1218
    %v1221 = vadd.f32 %v1215, %v1219
    %v1222 = vtanh.pop %v1221
    %v1223 = vmul.f32 %v1214, %v1222
    %v1224 = vpack.c.bf16 %v1223, %v1223
    %1226 = vrot.lane.b32.xlu0 %v1224, 64
    %v1227 = vpop.permute.xlu0 %1226
    %v1230 = vsel %vm183, %v1227, %v1148
    %1232 = vmatprep.subr.bf16.mxu0 %v319
    %1233 = vmatpush1.bf16.msra.mxu0 %v318
    %1234 = vmatprep.subr.bf16.mxu0 %v321
    %1235 = vmatpush1.bf16.msra.mxu0 %v320
    %1236 = vmatprep.subr.bf16.mxu0 %v323
    %1237 = vmatpush1.bf16.msra.mxu0 %v322
    %1238 = vmatprep.subr.bf16.mxu0 %v325
    %1239 = vmatpush1.bf16.msra.mxu0 %v324
    %1240 = vmatprep.subr.bf16.mxu0 %v327
    %1241 = vmatpush1.bf16.msra.mxu0 %v326
    %1242 = vmatprep.subr.bf16.mxu0 %v329
    %1243 = vmatpush1.bf16.msra.mxu0 %v328
    %1244 = vmatprep.subr.bf16.mxu0 %v331
    %1245 = vmatpush1.bf16.msra.mxu0 %v330
    %1246 = vmatprep.subr.bf16.mxu0 %v333
    %1247 = vmatpush1.bf16.msra.mxu0 %v332
    %1248 = vmatprep.subr.bf16.mxu0 0
    %1249 = vmatpush1.bf16.msra.mxu0 0
    %1250 = vmatprep.subr.bf16.mxu0 0
    %1251 = vmatpush1.bf16.msra.mxu0 0
    %1252 = vmatprep.subr.bf16.mxu0 0
    %1253 = vmatpush1.bf16.msra.mxu0 0
    %1254 = vmatprep.subr.bf16.mxu0 0
    %1255 = vmatpush1.bf16.msra.mxu0 0
    %1256 = vmatprep.subr.bf16.mxu0 0
    %1257 = vmatpush1.bf16.msra.mxu0 0
    %1258 = vmatprep.subr.bf16.mxu0 0
    %1259 = vmatpush1.bf16.msra.mxu0 0
    %1260 = vmatprep.subr.bf16.mxu0 0
    %1261 = vmatpush1.bf16.msra.mxu0 0
    %1262 = vmatprep.subr.bf16.mxu0 0
    %1263 = vmatpush1.bf16.msra.mxu0 0
    %1264 = vmatprep.mubr.bf16.mxu0 0
    %1265 = vmatmul.mubr.bf16.gmra.mrb[0].mxu0 %v1230
    %v1266 = vpop.f32.mrb[0].mxu0
    %v1267 = vadd.f32 %v263, %v1266
    %v1268 = vpop.f32.mrb[0].mxu0
    %v1269 = vadd.f32 %v267, %v1268
    %v1270 = vpop.f32.mrb[0].mxu0
    %v1271 = vpop.f32.mrb[0].mxu0
    %1272 = vdwg.mxu0
    %v1273 = vxor.u32 %v1267, 2147483648
    %v1274 = vmul.f32 %v1273, 1.442695
    %v1275 = vpow.pop %v1274
    %v1276 = vadd.f32 %v1275, 1.0
    %v1277 = vrcp.pop %v1276
    %v1278 = vmul.f32 1.0, %v1277
    %v1279 = vtanh.pop %v1269
    %v1280 = vxor.u32 %v1269, 2147483648
    %v1281 = vmul.f32 %v1280, 1.442695
    %v1282 = vpow.pop %v1281
    %v1283 = vadd.f32 %v1282, 1.0
    %v1284 = vrcp.pop %v1283
    %v1285 = vmul.f32 1.0, %v1284
    %v1286 = vmul.f32 %v1278, %v1145
    %v1287 = vmul.f32 %v1278, %v1279
    %1289 = vrot.lane.b32.xlu0 %v1287, 64
    %v1290 = vpop.permute.xlu0 %1289
    %v1292 = vadd.f32 %v1286, %v1290
    %v1293 = vtanh.pop %v1292
    %v1294 = vmul.f32 %v1285, %v1293
    %v1295 = vpack.c.bf16 %v1294, %v1294
    %1296 = vset.pattern.permute.xlu0 7
    %1297 = vperm.xlu0 %1296, %v111
    %v1298 = vpop.permute.xlu0 %1297
    %v1300 = vmul.f32 %v1298, %v121
    %v1301 = vmul.f32 %v1298, %v125
    %v1302 = vadd.f32 %v1300, %v134
    %v1303 = vadd.f32 %v1301, %v138
    %v1304 = vsel %vm183, %v1227, 0
    %1306 = vmatprep.subr.bf16.mxu0 %v168
    %1307 = vmatpush1.bf16.msra.mxu0 %v167
    %1308 = vmatprep.subr.bf16.mxu0 %v170
    %1309 = vmatpush1.bf16.msra.mxu0 %v169
    %1310 = vmatprep.subr.bf16.mxu0 %v172
    %1311 = vmatpush1.bf16.msra.mxu0 %v171
    %1312 = vmatprep.subr.bf16.mxu0 %v174
    %1313 = vmatpush1.bf16.msra.mxu0 %v173
    %1314 = vmatprep.subr.bf16.mxu0 0
    %1315 = vmatpush1.bf16.msra.mxu0 0
    %1316 = vmatprep.subr.bf16.mxu0 0
    %1317 = vmatpush1.bf16.msra.mxu0 0
    %1318 = vmatprep.subr.bf16.mxu0 0
    %1319 = vmatpush1.bf16.msra.mxu0 0
    %1320 = vmatprep.subr.bf16.mxu0 0
    %1321 = vmatpush1.bf16.msra.mxu0 0
    %1322 = vmatprep.subr.bf16.mxu0 0
    %1323 = vmatpush1.bf16.msra.mxu0 0
    %1324 = vmatprep.subr.bf16.mxu0 0
    %1325 = vmatpush1.bf16.msra.mxu0 0
    %1326 = vmatprep.subr.bf16.mxu0 0
    %1327 = vmatpush1.bf16.msra.mxu0 0
    %1328 = vmatprep.subr.bf16.mxu0 0
    %1329 = vmatpush1.bf16.msra.mxu0 0
    %1330 = vmatprep.subr.bf16.mxu0 0
    %1331 = vmatpush1.bf16.msra.mxu0 0
    %1332 = vmatprep.subr.bf16.mxu0 0
    %1333 = vmatpush1.bf16.msra.mxu0 0
    %1334 = vmatprep.subr.bf16.mxu0 0
    %1335 = vmatpush1.bf16.msra.mxu0 0
    %1336 = vmatprep.subr.bf16.mxu0 0
    %1337 = vmatpush1.bf16.msra.mxu0 0
    %1338 = vmatprep.mubr.bf16.mxu0 0
    %1339 = vmatmul.mubr.bf16.gmra.mrb[0].mxu0 %v1304
    %v1340 = vpop.f32.mrb[0].mxu0
    %v1341 = vadd.f32 0.0, %v1340
    %v1342 = vpop.f32.mrb[0].mxu0
    %v1343 = vadd.f32 0.0, %v1342
    %v1344 = vpop.f32.mrb[0].mxu0
    %v1345 = vpop.f32.mrb[0].mxu0
    %1346 = vdwg.mxu0
    %v1347 = vadd.f32 %v1302, %v1341
    %v1348 = vadd.f32 %v1303, %v1343
    %v1349 = vxor.u32 %v1347, 2147483648
    %v1350 = vmul.f32 %v1349, 1.442695
    %v1351 = vpow.pop %v1350
    %v1352 = vadd.f32 %v1351, 1.0
    %v1353 = vrcp.pop %v1352
    %v1354 = vmul.f32 1.0, %v1353
    %v1355 = vtanh.pop %v1348
    %v1356 = vxor.u32 %v1348, 2147483648
    %v1357 = vmul.f32 %v1356, 1.442695
    %v1358 = vpow.pop %v1357
    %v1359 = vadd.f32 %v1358, 1.0
    %v1360 = vrcp.pop %v1359
    %v1361 = vmul.f32 1.0, %v1360
    %v1362 = vmul.f32 %v1354, %v1221
    %v1363 = vmul.f32 %v1354, %v1355
    %1365 = vrot.lane.b32.xlu0 %v1363, 64
    %v1366 = vpop.permute.xlu0 %1365
    %v1368 = vadd.f32 %v1362, %v1366
    %v1369 = vtanh.pop %v1368
    %v1370 = vmul.f32 %v1361, %v1369
    %v1371 = vpack.c.bf16 %v1370, %v1370
    %1373 = vrot.lane.b32.xlu0 %v1371, 64
    %v1374 = vpop.permute.xlu0 %1373
    %v1377 = vsel %vm183, %v1374, %v1295
    %1379 = vmatprep.subr.bf16.mxu0 %v319
    %1380 = vmatpush1.bf16.msra.mxu0 %v318
    %1381 = vmatprep.subr.bf16.mxu0 %v321
    %1382 = vmatpush1.bf16.msra.mxu0 %v320
    %1383 = vmatprep.subr.bf16.mxu0 %v323
    %1384 = vmatpush1.bf16.msra.mxu0 %v322
    %1385 = vmatprep.subr.bf16.mxu0 %v325
    %1386 = vmatpush1.bf16.msra.mxu0 %v324
    %1387 = vmatprep.subr.bf16.mxu0 %v327
    %1388 = vmatpush1.bf16.msra.mxu0 %v326
    %1389 = vmatprep.subr.bf16.mxu0 %v329
    %1390 = vmatpush1.bf16.msra.mxu0 %v328
    %1391 = vmatprep.subr.bf16.mxu0 %v331
    %1392 = vmatpush1.bf16.msra.mxu0 %v330
    %1393 = vmatprep.subr.bf16.mxu0 %v333
    %1394 = vmatpush1.bf16.msra.mxu0 %v332
    %1395 = vmatprep.subr.bf16.mxu0 0
    %1396 = vmatpush1.bf16.msra.mxu0 0
    %1397 = vmatprep.subr.bf16.mxu0 0
    %1398 = vmatpush1.bf16.msra.mxu0 0
    %1399 = vmatprep.subr.bf16.mxu0 0
    %1400 = vmatpush1.bf16.msra.mxu0 0
    %1401 = vmatprep.subr.bf16.mxu0 0
    %1402 = vmatpush1.bf16.msra.mxu0 0
    %1403 = vmatprep.subr.bf16.mxu0 0
    %1404 = vmatpush1.bf16.msra.mxu0 0
    %1405 = vmatprep.subr.bf16.mxu0 0
    %1406 = vmatpush1.bf16.msra.mxu0 0
    %1407 = vmatprep.subr.bf16.mxu0 0
    %1408 = vmatpush1.bf16.msra.mxu0 0
    %1409 = vmatprep.subr.bf16.mxu0 0
    %1410 = vmatpush1.bf16.msra.mxu0 0
    %1411 = vmatprep.mubr.bf16.mxu0 0
    %1412 = vmatmul.mubr.bf16.gmra.mrb[0].mxu0 %v1377
    %v1413 = vpop.f32.mrb[0].mxu0
    %v1414 = vadd.f32 %v263, %v1413
    %v1415 = vpop.f32.mrb[0].mxu0
    %v1416 = vadd.f32 %v267, %v1415
    %v1417 = vpop.f32.mrb[0].mxu0
    %v1418 = vpop.f32.mrb[0].mxu0
    %1419 = vdwg.mxu0
    %v1420 = vxor.u32 %v1414, 2147483648
    %v1421 = vmul.f32 %v1420, 1.442695
    %v1422 = vpow.pop %v1421
    %v1423 = vadd.f32 %v1422, 1.0
    %v1424 = vrcp.pop %v1423
    %v1425 = vmul.f32 1.0, %v1424
    %v1426 = vtanh.pop %v1416
    %v1427 = vxor.u32 %v1416, 2147483648
    %v1428 = vmul.f32 %v1427, 1.442695
    %v1429 = vpow.pop %v1428
    %v1430 = vadd.f32 %v1429, 1.0
    %v1431 = vrcp.pop %v1430
    %v1432 = vmul.f32 1.0, %v1431
    %v1433 = vmul.f32 %v1425, %v1292
    %v1434 = vmul.f32 %v1425, %v1426
    %1436 = vrot.lane.b32.xlu0 %v1434, 64
    %v1437 = vpop.permute.xlu0 %1436
    %v1439 = vadd.f32 %v1433, %v1437
    %v1440 = vtanh.pop %v1439
    %v1441 = vmul.f32 %v1432, %v1440
    %v1442 = vpack.c.bf16 %v1441, %v1441
    %v1443 = vld [vmem:[#allocation8] sm:$0xf]
    %v1444 = vld [vmem:[#allocation8 + $0x4] sm:$0xf]
    %v1445 = vld [vmem:[#allocation8 + $0x8] sm:$0xf]
    %v1446 = vld [vmem:[#allocation8 + $0xc] sm:$0xf]
    %v1447 = vld [vmem:[#allocation8 + $0x10] sm:$0xf]
    %v1448 = vld [vmem:[#allocation8 + $0x14] sm:$0xf]
    %v1449 = vld [vmem:[#allocation8 + $0x18] sm:$0xf]
    %v1450 = vld [vmem:[#allocation8 + $0x1c] sm:$0xf]
    %v1451 = vld [vmem:[%s7] sm:$0x1]
    %v1453 = vlaneseq
    %v1454 = vshrl.u32 %v1453, 7
    %v1455 = vsub.s32 0, %v1454
    %v1456 = vrot.slane %v1451, %v1455
    %1459 = vrot.lane.b32.xlu0 %v1442, 64
    %v1460 = vpop.permute.xlu0 %1459
    %v1469 = vunpack.c.l.b16 %v1443
    %v1470 = vunpack.c.l.b16 %v1444
    %v1471 = vunpack.c.l.b16 %v1445
    %v1472 = vunpack.c.l.b16 %v1446
    %v1473 = vunpack.c.l.b16 %v1447
    %v1474 = vunpack.c.l.b16 %v1448
    %v1475 = vunpack.c.l.b16 %v1449
    %v1476 = vunpack.c.l.b16 %v1450
    %v1477 = vpack.c.b16 %v1470, %v1469
    %v1478 = vpack.c.b16 %v1472, %v1471
    %v1479 = vpack.c.b16 %v1474, %v1473
    %v1480 = vpack.c.b16 %v1476, %v1475
    %v1486 = vsel %vm183, %v1460, 0
    %1488 = vmatprep.subr.bf16.mxu0 0
    %1489 = vmatpush1.bf16.msra.mxu0 %v1477
    %1490 = vmatprep.subr.bf16.mxu0 0
    %1491 = vmatpush1.bf16.msra.mxu0 %v1478
    %1492 = vmatprep.subr.bf16.mxu0 0
    %1493 = vmatpush1.bf16.msra.mxu0 %v1479
    %1494 = vmatprep.subr.bf16.mxu0 0
    %1495 = vmatpush1.bf16.msra.mxu0 %v1480
    %1496 = vmatprep.subr.bf16.mxu0 0
    %1497 = vmatpush1.bf16.msra.mxu0 0
    %1498 = vmatprep.subr.bf16.mxu0 0
    %1499 = vmatpush1.bf16.msra.mxu0 0
    %1500 = vmatprep.subr.bf16.mxu0 0
    %1501 = vmatpush1.bf16.msra.mxu0 0
    %1502 = vmatprep.subr.bf16.mxu0 0
    %1503 = vmatpush1.bf16.msra.mxu0 0
    %1504 = vmatprep.subr.bf16.mxu0 0
    %1505 = vmatpush1.bf16.msra.mxu0 0
    %1506 = vmatprep.subr.bf16.mxu0 0
    %1507 = vmatpush1.bf16.msra.mxu0 0
    %1508 = vmatprep.subr.bf16.mxu0 0
    %1509 = vmatpush1.bf16.msra.mxu0 0
    %1510 = vmatprep.subr.bf16.mxu0 0
    %1511 = vmatpush1.bf16.msra.mxu0 0
    %1512 = vmatprep.subr.bf16.mxu0 0
    %1513 = vmatpush1.bf16.msra.mxu0 0
    %1514 = vmatprep.subr.bf16.mxu0 0
    %1515 = vmatpush1.bf16.msra.mxu0 0
    %1516 = vmatprep.subr.bf16.mxu0 0
    %1517 = vmatpush1.bf16.msra.mxu0 0
    %1518 = vmatprep.subr.bf16.mxu0 0
    %1519 = vmatpush1.bf16.msra.mxu0 0
    %1520 = vmatprep.mubr.bf16.mxu0 0
    %1521 = vmatmul.mubr.bf16.gmra.mrb[0].mxu0 %v1486
    %v1522 = vpop.f32.mrb[0].mxu0
    %v1523 = vadd.f32 %v1456, %v1522
    %v1524 = vpop.f32.mrb[0].mxu0
    %v1525 = vpop.f32.mrb[0].mxu0
    %v1526 = vpop.f32.mrb[0].mxu0
    %1527 = vdwg.mxu0
    %1528 = vst [vmem:[#allocation10] sm:$0xff] %v1523
    // Predicated region
    $region50: #{tpu_custom_call.1} parent=1 // pred_check
      _
    $region51: #{tpu_custom_call.1} parent=1 // pred_check_branch
      %1530 = sbr.rel (0) target = $region53
    $region52: #{tpu_custom_call.1} parent=1 // pred_region
      %s1532 = ssub.s32 128, 128
      %1533 = vsyncadd [#allocation4], %s1532
      %s1535 = sshll.u32 [#allocation10], 4
      %s1536 = int_to_ptr.vmem [resolvable:$true] %s1535
      %1538 = dma.vmem_to_hbm [thread:$0]  %s1536, 128, %s8, [#allocation4]
    $region53: #{tpu_custom_call.1} parent=1 // pred_fallthru
      _
    // Predicated region
    $region54: #{tpu_custom_call.1} parent=1 // pred_check
      _
    $region55: #{tpu_custom_call.1} parent=1 // pred_check_branch
      %1540 = sbr.rel (0) target = $region57
    $region56: #{tpu_custom_call.1} parent=1 // pred_region
      %1541 = dma.done [#allocation4], 128
    $region57: #{tpu_custom_call.1} parent=1 // pred_fallthru
      _
    %1542 = vsyncpa [#allocation3], 1
    %1543 = vsyncpa [#allocation6], 1
    %1544 = vsyncpa [#allocation9], 1
    %1545 = vsyncpa [#allocation4], 1

</llo_original>
